<compile_context>
chip_gen: v5e
topology: v5e:2x2
jax: 0.10.0
libtpu: 0.0.40
codegen_flags: <defaults>
</compile_context>

<pallas_src>
import functools

import jax
import jax.numpy as jnp
from jax.experimental import pallas as pl
from jax.experimental.pallas import tpu as pltpu


def _layer_norm(v, g, b, eps=1e-5):
    mu = jnp.mean(v, axis=-1, keepdims=True)
    var = jnp.mean((v - mu) ** 2, axis=-1, keepdims=True)
    return (v - mu) * jax.lax.rsqrt(var + eps) * g + b


def _gelu_new(v):
    # GPT2's "gelu_new" (tanh approximation)
    return 0.5 * v * (1.0 + jnp.tanh(0.7978845608028654 * (v + 0.044715 * v * v * v)))


def gpt2_block_adapter_kernel(
    x_ref,
    ln1_g_ref, ln1_b_ref,
    w_q_ref, b_q_ref, w_k_ref, b_k_ref, w_v_ref, b_v_ref,
    w_ao_ref, b_ao_ref,
    ln2_g_ref, ln2_b_ref,
    w_fc_ref, b_fc_ref, w_mo_ref, b_mo_ref,
    w_dn_ref, b_dn_ref, w_up_ref, b_up_ref,
    out_ref,
    *, n_head,
):
    f32 = jnp.float32
    bf16 = jnp.bfloat16

    x = x_ref[0]                                   # (S, H) f32
    S, H = x.shape

    # ---- attention (batched over heads, leading batch dim) ----------------
    h1 = _layer_norm(x, ln1_g_ref[0], ln1_b_ref[0])            # f32
    h1h = jnp.broadcast_to(h1.astype(bf16), (n_head, S, H))    # (nh, S, H) bf16

    # Per-head projections; softmax scale is pre-folded into w_q / b_q.
    q = jnp.einsum('hsk,hkd->hsd', h1h, w_q_ref[...],
                   preferred_element_type=f32) + b_q_ref[...]
    k = jnp.einsum('hsk,hkd->hsd', h1h, w_k_ref[...],
                   preferred_element_type=f32) + b_k_ref[...]
    v = jnp.einsum('hsk,hkd->hsd', h1h, w_v_ref[...],
                   preferred_element_type=f32) + b_v_ref[...]

    scores = jnp.einsum('hqd,hkd->hqk', q.astype(bf16), k.astype(bf16),
                        preferred_element_type=f32)            # (nh, S, S)
    row = jax.lax.broadcasted_iota(jnp.int32, (S, S), 0)
    col = jax.lax.broadcasted_iota(jnp.int32, (S, S), 1)
    causal = (row >= col)[None, :, :]
    scores = jnp.where(causal, scores, jnp.float32(-1e30))

    scores = scores - jnp.max(scores, axis=-1, keepdims=True)
    p = jnp.exp(scores)
    p = p * pl.reciprocal(jnp.sum(p, axis=-1, keepdims=True), approx=True)

    ctx = jnp.einsum('hqk,hkd->hqd', p.astype(bf16), v.astype(bf16),
                     preferred_element_type=f32)               # (nh, S, dh)
    proj = jnp.einsum('hsd,hdo->hso', ctx.astype(bf16), w_ao_ref[...],
                      preferred_element_type=f32)              # (nh, S, H)
    attn = jnp.sum(proj, axis=0) + b_ao_ref[0]                 # (S, H)
    x = x + attn

    # ---- MLP ---------------------------------------------------------------
    h2 = _layer_norm(x, ln2_g_ref[0], ln2_b_ref[0])
    ff = _gelu_new(jnp.dot(h2.astype(bf16), w_fc_ref[...],
                           preferred_element_type=f32) + b_fc_ref[0])
    ff = jnp.dot(ff.astype(bf16), w_mo_ref[...],
                 preferred_element_type=f32) + b_mo_ref[0]
    x = x + ff

    # ---- Adapter (bottleneck zero-padded to lane-dense width) --------------
    a = _gelu_new(jnp.dot(x.astype(bf16), w_dn_ref[...],
                          preferred_element_type=f32) + b_dn_ref[0])
    a = jnp.dot(a.astype(bf16), w_up_ref[...],
                preferred_element_type=f32) + b_up_ref[0]
    out_ref[0] = x + a


def _round_up(n, m):
    return ((n + m - 1) // m) * m


def prepare_params(params, *, n_head):
    """Host-side prep: fold softmax scale into Q, split heads, cast to bf16,
    pad adapter bottleneck to a multiple of 128 (math-preserving)."""
    bf16 = jnp.bfloat16
    f32 = jnp.float32

    H = params["w_qkv"].shape[0]
    d_head = H // n_head
    scale = 1.0 / float(d_head) ** 0.5

    w_qkv = params["w_qkv"].astype(f32)
    b_qkv = params["b_qkv"].astype(f32)

    def w_heads(w):   # (H, H) -> (n_head, H, d_head)
        return jnp.transpose(w.reshape(H, n_head, d_head), (1, 0, 2))

    def b_heads(b):   # (1, H) -> (n_head, 1, d_head)
        return jnp.transpose(b.reshape(1, n_head, d_head), (1, 0, 2))

    A = params["w_dn"].shape[1]
    pad_a = _round_up(A, 128) - A

    return dict(
        ln1_g=params["ln1_g"].astype(f32),
        ln1_b=params["ln1_b"].astype(f32),
        w_q=w_heads(w_qkv[:, :H] * scale).astype(bf16),
        b_q=b_heads(b_qkv[:, :H] * scale),
        w_k=w_heads(w_qkv[:, H:2 * H]).astype(bf16),
        b_k=b_heads(b_qkv[:, H:2 * H]),
        w_v=w_heads(w_qkv[:, 2 * H:]).astype(bf16),
        b_v=b_heads(b_qkv[:, 2 * H:]),
        w_ao=params["w_ao"].astype(f32).reshape(n_head, d_head, H).astype(bf16),
        b_ao=params["b_ao"].astype(f32),
        ln2_g=params["ln2_g"].astype(f32),
        ln2_b=params["ln2_b"].astype(f32),
        w_fc=params["w_fc"].astype(bf16),
        b_fc=params["b_fc"].astype(f32),
        w_mo=params["w_mo"].astype(bf16),
        b_mo=params["b_mo"].astype(f32),
        w_dn=jnp.pad(params["w_dn"].astype(f32), ((0, 0), (0, pad_a))).astype(bf16),
        b_dn=jnp.pad(params["b_dn"].astype(f32), ((0, 0), (0, pad_a))),
        w_up=jnp.pad(params["w_up"].astype(f32), ((0, pad_a), (0, 0))).astype(bf16),
        b_up=params["b_up"].astype(f32),
    )


_PARAM_ORDER = (
    "ln1_g", "ln1_b",
    "w_q", "b_q", "w_k", "b_k", "w_v", "b_v",
    "w_ao", "b_ao",
    "ln2_g", "ln2_b",
    "w_fc", "b_fc", "w_mo", "b_mo",
    "w_dn", "b_dn", "w_up", "b_up",
)


def gpt2_block_with_adapter(hidden_states, params, *, n_head):
    B, S, H = hidden_states.shape
    prep = prepare_params(params, n_head=n_head)
    weight_args = [prep[k] for k in _PARAM_ORDER]

    def const_spec(arr):
        nd = arr.ndim
        return pl.BlockSpec(arr.shape, lambda b, _nd=nd: (0,) * _nd)

    in_specs = [pl.BlockSpec((1, S, H), lambda b: (b, 0, 0))]
    in_specs += [const_spec(a) for a in weight_args]

    out = pl.pallas_call(
        functools.partial(gpt2_block_adapter_kernel, n_head=n_head),
        out_shape=jax.ShapeDtypeStruct((B, S, H), jnp.float32),
        grid=(B,),
        in_specs=in_specs,
        out_specs=pl.BlockSpec((1, S, H), lambda b: (b, 0, 0)),
        compiler_params=pltpu.CompilerParams(
            dimension_semantics=("parallel",),
            vmem_limit_bytes=64 * 1024 * 1024,
        ),
    )(hidden_states.astype(jnp.float32), *weight_args)
    return out


# -------- pure-JAX reference (f32, unmodified params) ------------------------
def reference(hidden_states, params, *, n_head):
    def one(x):
        H = x.shape[-1]
        d_head = H // n_head
        h1 = _layer_norm(x, params["ln1_g"][0], params["ln1_b"][0])
        qkv = h1 @ params["w_qkv"] + params["b_qkv"][0]
        q, k, v = qkv[:, :H], qkv[:, H:2 * H], qkv[:, 2 * H:]
        S = x.shape[0]
        causal = jnp.tril(jnp.ones((S, S), bool))
        outs = []
        for hh in range(n_head):
            sl = slice(hh * d_head, (hh + 1) * d_head)
            sc = (q[:, sl] @ k[:, sl].T) / jnp.sqrt(jnp.float32(d_head))
            sc = jnp.where(causal, sc, -1e30)
            p = jax.nn.softmax(sc, axis=-1)
            outs.append(p @ v[:, sl])
        attn = jnp.concatenate(outs, -1) @ params["w_ao"] + params["b_ao"][0]
        x = x + attn
        h2 = _layer_norm(x, params["ln2_g"][0], params["ln2_b"][0])
        ff = _gelu_new(h2 @ params["w_fc"] + params["b_fc"][0]) @ params["w_mo"] + params["b_mo"][0]
        x = x + ff
        a = _gelu_new(x @ params["w_dn"] + params["b_dn"][0]) @ params["w_up"] + params["b_up"][0]
        return x + a

    return jax.vmap(one)(hidden_states)


def make_params(key, H, n_head, adapter_size=64):
    F = 4 * H
    ks = jax.random.split(key, 12)
    return {
        "ln1_g": jnp.ones((1, H), jnp.float32),
        "ln1_b": jnp.zeros((1, H), jnp.float32),
        "w_qkv": 0.02 * jax.random.normal(ks[0], (H, 3 * H), jnp.float32),
        "b_qkv": 0.01 * jax.random.normal(ks[1], (1, 3 * H), jnp.float32),
        "w_ao": 0.02 * jax.random.normal(ks[2], (H, H), jnp.float32),
        "b_ao": 0.01 * jax.random.normal(ks[3], (1, H), jnp.float32),
        "ln2_g": jnp.ones((1, H), jnp.float32),
        "ln2_b": jnp.zeros((1, H), jnp.float32),
        "w_fc": 0.02 * jax.random.normal(ks[4], (H, F), jnp.float32),
        "b_fc": 0.01 * jax.random.normal(ks[5], (1, F), jnp.float32),
        "w_mo": 0.02 * jax.random.normal(ks[6], (F, H), jnp.float32),
        "b_mo": 0.01 * jax.random.normal(ks[7], (1, H), jnp.float32),
        "w_dn": 0.02 * jax.random.normal(ks[8], (H, adapter_size), jnp.float32),
        "b_dn": 0.01 * jax.random.normal(ks[9], (1, adapter_size), jnp.float32),
        "w_up": 0.02 * jax.random.normal(ks[10], (adapter_size, H), jnp.float32),
        "b_up": 0.01 * jax.random.normal(ks[11], (1, H), jnp.float32),
    }


if __name__ == "__main__":
    B, S, H, n_head = 2, 8, 32, 4          # small GPT2-like config
    key = jax.random.PRNGKey(0)
    k_x, k_p = jax.random.split(key)
    hidden_states = jax.random.normal(k_x, (B, S, H), jnp.float32)
    params = make_params(k_p, H, n_head, adapter_size=64)

    out = gpt2_block_with_adapter(hidden_states, params, n_head=n_head)
    out = jax.block_until_ready(out)

    ref = reference(hidden_states, params, n_head=n_head)
    assert out.shape == (B, S, H)
    # bf16 weights / approx-reciprocal softmax => compare at bf16-level tolerance
    assert jnp.allclose(out, ref, atol=2e-2, rtol=2e-2), "mismatch vs JAX reference"

    print("KERNEL_OK")
</pallas_src>

<mosaic_0001>
module attributes {stable_mosaic.version = 11 : i64} {
  func.func @gpt2_block_adapter_kernel(%arg0: i32, %arg1: memref<1x8x32xf32, #tpu.memory_space<vmem>>, %arg2: memref<1x32xf32, #tpu.memory_space<vmem>>, %arg3: memref<1x32xf32, #tpu.memory_space<vmem>>, %arg4: memref<4x32x8xbf16, #tpu.memory_space<vmem>>, %arg5: memref<4x1x8xf32, #tpu.memory_space<vmem>>, %arg6: memref<4x32x8xbf16, #tpu.memory_space<vmem>>, %arg7: memref<4x1x8xf32, #tpu.memory_space<vmem>>, %arg8: memref<4x32x8xbf16, #tpu.memory_space<vmem>>, %arg9: memref<4x1x8xf32, #tpu.memory_space<vmem>>, %arg10: memref<4x8x32xbf16, #tpu.memory_space<vmem>>, %arg11: memref<1x32xf32, #tpu.memory_space<vmem>>, %arg12: memref<1x32xf32, #tpu.memory_space<vmem>>, %arg13: memref<1x32xf32, #tpu.memory_space<vmem>>, %arg14: memref<32x128xbf16, #tpu.memory_space<vmem>>, %arg15: memref<1x128xf32, #tpu.memory_space<vmem>>, %arg16: memref<128x32xbf16, #tpu.memory_space<vmem>>, %arg17: memref<1x32xf32, #tpu.memory_space<vmem>>, %arg18: memref<32x128xbf16, #tpu.memory_space<vmem>>, %arg19: memref<1x128xf32, #tpu.memory_space<vmem>>, %arg20: memref<128x32xbf16, #tpu.memory_space<vmem>>, %arg21: memref<1x32xf32, #tpu.memory_space<vmem>>, %arg22: memref<1x8x32xf32, #tpu.memory_space<vmem>>) attributes {dimension_semantics = [#tpu.dimension_semantics<parallel>], iteration_bounds = array<i64: 2>, scalar_prefetch = 0 : i64, scratch_operands = 0 : i64, tpu.core_type = #tpu.core_type<tc>, window_params = [{transform_indices = @transform_0, window_bounds = array<i64: 1, 8, 32>}, {pipeline_mode = #tpu.pipeline_mode<synchronous>, transform_indices = @transform_1, window_bounds = array<i64: 1, 32>}, {pipeline_mode = #tpu.pipeline_mode<synchronous>, transform_indices = @transform_2, window_bounds = array<i64: 1, 32>}, {pipeline_mode = #tpu.pipeline_mode<synchronous>, transform_indices = @transform_3, window_bounds = array<i64: 4, 32, 8>}, {pipeline_mode = #tpu.pipeline_mode<synchronous>, transform_indices = @transform_4, window_bounds = array<i64: 4, 1, 8>}, {pipeline_mode = #tpu.pipeline_mode<synchronous>, transform_indices = @transform_5, window_bounds = array<i64: 4, 32, 8>}, {pipeline_mode = #tpu.pipeline_mode<synchronous>, transform_indices = @transform_6, window_bounds = array<i64: 4, 1, 8>}, {pipeline_mode = #tpu.pipeline_mode<synchronous>, transform_indices = @transform_7, window_bounds = array<i64: 4, 32, 8>}, {pipeline_mode = #tpu.pipeline_mode<synchronous>, transform_indices = @transform_8, window_bounds = array<i64: 4, 1, 8>}, {pipeline_mode = #tpu.pipeline_mode<synchronous>, transform_indices = @transform_9, window_bounds = array<i64: 4, 8, 32>}, {pipeline_mode = #tpu.pipeline_mode<synchronous>, transform_indices = @transform_10, window_bounds = array<i64: 1, 32>}, {pipeline_mode = #tpu.pipeline_mode<synchronous>, transform_indices = @transform_11, window_bounds = array<i64: 1, 32>}, {pipeline_mode = #tpu.pipeline_mode<synchronous>, transform_indices = @transform_12, window_bounds = array<i64: 1, 32>}, {pipeline_mode = #tpu.pipeline_mode<synchronous>, transform_indices = @transform_13, window_bounds = array<i64: 32, 128>}, {pipeline_mode = #tpu.pipeline_mode<synchronous>, transform_indices = @transform_14, window_bounds = array<i64: 1, 128>}, {pipeline_mode = #tpu.pipeline_mode<synchronous>, transform_indices = @transform_15, window_bounds = array<i64: 128, 32>}, {pipeline_mode = #tpu.pipeline_mode<synchronous>, transform_indices = @transform_16, window_bounds = array<i64: 1, 32>}, {pipeline_mode = #tpu.pipeline_mode<synchronous>, transform_indices = @transform_17, window_bounds = array<i64: 32, 128>}, {pipeline_mode = #tpu.pipeline_mode<synchronous>, transform_indices = @transform_18, window_bounds = array<i64: 1, 128>}, {pipeline_mode = #tpu.pipeline_mode<synchronous>, transform_indices = @transform_19, window_bounds = array<i64: 128, 32>}, {pipeline_mode = #tpu.pipeline_mode<synchronous>, transform_indices = @transform_20, window_bounds = array<i64: 1, 32>}, {transform_indices = @transform_21, window_bounds = array<i64: 1, 8, 32>}]} {
    %c0 = arith.constant 0 : index
    %c0_0 = arith.constant 0 : index
    %c0_1 = arith.constant 0 : index
    %0 = vector.load %arg1[%c0, %c0_0, %c0_1] : memref<1x8x32xf32, #tpu.memory_space<vmem>>, vector<1x8x32xf32>
    %1 = vector.shape_cast %0 : vector<1x8x32xf32> to vector<8x32xf32>
    %c0_2 = arith.constant 0 : index
    %c0_3 = arith.constant 0 : index
    %2 = vector.load %arg2[%c0_2, %c0_3] : memref<1x32xf32, #tpu.memory_space<vmem>>, vector<1x32xf32>
    %3 = vector.shape_cast %2 : vector<1x32xf32> to vector<32xf32>
    %c0_4 = arith.constant 0 : index
    %c0_5 = arith.constant 0 : index
    %4 = vector.load %arg3[%c0_4, %c0_5] : memref<1x32xf32, #tpu.memory_space<vmem>>, vector<1x32xf32>
    %5 = vector.shape_cast %4 : vector<1x32xf32> to vector<32xf32>
    %cst = arith.constant dense<0.000000e+00> : vector<8xf32>
    %6 = vector.multi_reduction <add>, %1, %cst [1] : vector<8x32xf32> to vector<8xf32>
    %7 = vector.shape_cast %6 : vector<8xf32> to vector<8x1xf32>
    %cst_6 = arith.constant 3.200000e+01 : f32
    %8 = vector.broadcast %cst_6 : f32 to vector<8x1xf32>
    %9 = arith.divf %7, %8 : vector<8x1xf32>
    %10 = vector.broadcast %9 : vector<8x1xf32> to vector<8x32xf32>
    %11 = arith.subf %1, %10 : vector<8x32xf32>
    %12 = arith.mulf %11, %11 : vector<8x32xf32>
    %cst_7 = arith.constant dense<0.000000e+00> : vector<8xf32>
    %13 = vector.multi_reduction <add>, %12, %cst_7 [1] : vector<8x32xf32> to vector<8xf32>
    %14 = vector.shape_cast %13 : vector<8xf32> to vector<8x1xf32>
    %cst_8 = arith.constant 3.200000e+01 : f32
    %15 = vector.broadcast %cst_8 : f32 to vector<8x1xf32>
    %16 = arith.divf %14, %15 : vector<8x1xf32>
    %17 = vector.broadcast %9 : vector<8x1xf32> to vector<8x32xf32>
    %18 = arith.subf %1, %17 : vector<8x32xf32>
    %cst_9 = arith.constant 9.99999974E-6 : f32
    %19 = vector.broadcast %cst_9 : f32 to vector<8x1xf32>
    %20 = arith.addf %16, %19 : vector<8x1xf32>
    %21 = math.rsqrt %20 : vector<8x1xf32>
    %22 = vector.broadcast %21 : vector<8x1xf32> to vector<8x32xf32>
    %23 = arith.mulf %18, %22 : vector<8x32xf32>
    %24 = vector.shape_cast %3 : vector<32xf32> to vector<1x32xf32>
    %25 = vector.broadcast %24 : vector<1x32xf32> to vector<8x32xf32>
    %26 = arith.mulf %23, %25 : vector<8x32xf32>
    %27 = vector.shape_cast %5 : vector<32xf32> to vector<1x32xf32>
    %28 = vector.broadcast %27 : vector<1x32xf32> to vector<8x32xf32>
    %29 = arith.addf %26, %28 : vector<8x32xf32>
    %30 = arith.truncf %29 : vector<8x32xf32> to vector<8x32xbf16>
    %31 = vector.shape_cast %30 : vector<8x32xbf16> to vector<1x8x32xbf16>
    %32 = vector.broadcast %31 : vector<1x8x32xbf16> to vector<4x8x32xbf16>
    %c0_10 = arith.constant 0 : index
    %c0_11 = arith.constant 0 : index
    %c0_12 = arith.constant 0 : index
    %33 = vector.load %arg4[%c0_10, %c0_11, %c0_12] : memref<4x32x8xbf16, #tpu.memory_space<vmem>>, vector<4x32x8xbf16>
    "tpu.trace_start"() <{level = 10 : i32, message = "hsk,hkd->hsd"}> : () -> ()
    %cst_13 = arith.constant dense<0.000000e+00> : vector<4x8x8xf32>
    %34 = tpu.matmul %32, %33, %cst_13 {dimension_numbers = #tpu.dot_dimension_numbers<[2], [1], [1], [2], [0, 0, 0, 1, 1, 2], [0], [0]>} : vector<4x8x32xbf16>, vector<4x32x8xbf16>, vector<4x8x8xf32> -> vector<4x8x8xf32>
    "tpu.trace_stop"() : () -> ()
    %c0_14 = arith.constant 0 : index
    %c0_15 = arith.constant 0 : index
    %c0_16 = arith.constant 0 : index
    %35 = vector.load %arg5[%c0_14, %c0_15, %c0_16] : memref<4x1x8xf32, #tpu.memory_space<vmem>>, vector<4x1x8xf32>
    %36 = vector.broadcast %35 : vector<4x1x8xf32> to vector<4x8x8xf32>
    %37 = arith.addf %34, %36 : vector<4x8x8xf32>
    %c0_17 = arith.constant 0 : index
    %c0_18 = arith.constant 0 : index
    %c0_19 = arith.constant 0 : index
    %38 = vector.load %arg6[%c0_17, %c0_18, %c0_19] : memref<4x32x8xbf16, #tpu.memory_space<vmem>>, vector<4x32x8xbf16>
    "tpu.trace_start"() <{level = 10 : i32, message = "hsk,hkd->hsd"}> : () -> ()
    %cst_20 = arith.constant dense<0.000000e+00> : vector<4x8x8xf32>
    %39 = tpu.matmul %32, %38, %cst_20 {dimension_numbers = #tpu.dot_dimension_numbers<[2], [1], [1], [2], [0, 0, 0, 1, 1, 2], [0], [0]>} : vector<4x8x32xbf16>, vector<4x32x8xbf16>, vector<4x8x8xf32> -> vector<4x8x8xf32>
    "tpu.trace_stop"() : () -> ()
    %c0_21 = arith.constant 0 : index
    %c0_22 = arith.constant 0 : index
    %c0_23 = arith.constant 0 : index
    %40 = vector.load %arg7[%c0_21, %c0_22, %c0_23] : memref<4x1x8xf32, #tpu.memory_space<vmem>>, vector<4x1x8xf32>
    %41 = vector.broadcast %40 : vector<4x1x8xf32> to vector<4x8x8xf32>
    %42 = arith.addf %39, %41 : vector<4x8x8xf32>
    %c0_24 = arith.constant 0 : index
    %c0_25 = arith.constant 0 : index
    %c0_26 = arith.constant 0 : index
    %43 = vector.load %arg8[%c0_24, %c0_25, %c0_26] : memref<4x32x8xbf16, #tpu.memory_space<vmem>>, vector<4x32x8xbf16>
    "tpu.trace_start"() <{level = 10 : i32, message = "hsk,hkd->hsd"}> : () -> ()
    %cst_27 = arith.constant dense<0.000000e+00> : vector<4x8x8xf32>
    %44 = tpu.matmul %32, %43, %cst_27 {dimension_numbers = #tpu.dot_dimension_numbers<[2], [1], [1], [2], [0, 0, 0, 1, 1, 2], [0], [0]>} : vector<4x8x32xbf16>, vector<4x32x8xbf16>, vector<4x8x8xf32> -> vector<4x8x8xf32>
    "tpu.trace_stop"() : () -> ()
    %c0_28 = arith.constant 0 : index
    %c0_29 = arith.constant 0 : index
    %c0_30 = arith.constant 0 : index
    %45 = vector.load %arg9[%c0_28, %c0_29, %c0_30] : memref<4x1x8xf32, #tpu.memory_space<vmem>>, vector<4x1x8xf32>
    %46 = vector.broadcast %45 : vector<4x1x8xf32> to vector<4x8x8xf32>
    %47 = arith.addf %44, %46 : vector<4x8x8xf32>
    %48 = arith.truncf %37 : vector<4x8x8xf32> to vector<4x8x8xbf16>
    %49 = arith.truncf %42 : vector<4x8x8xf32> to vector<4x8x8xbf16>
    "tpu.trace_start"() <{level = 10 : i32, message = "hqd,hkd->hqk"}> : () -> ()
    %cst_31 = arith.constant dense<0.000000e+00> : vector<4x8x8xf32>
    %50 = tpu.matmul %48, %49, %cst_31 {dimension_numbers = #tpu.dot_dimension_numbers<[2], [2], [1], [1], [0, 0, 0, 1, 1, 1], [0], [0]>} : vector<4x8x8xbf16>, vector<4x8x8xbf16>, vector<4x8x8xf32> -> vector<4x8x8xf32>
    "tpu.trace_stop"() : () -> ()
    %51 = tpu.iota {dimensions = array<i32: 0>} : vector<8x8xi32>
    %52 = tpu.iota {dimensions = array<i32: 1>} : vector<8x8xi32>
    %53 = arith.cmpi sge, %51, %52 : vector<8x8xi32>
    %54 = vector.shape_cast %53 : vector<8x8xi1> to vector<1x8x8xi1>
    %cst_32 = arith.constant -1.000000e+30 : f32
    %55 = vector.shape_cast %54 : vector<1x8x8xi1> to vector<1x8x8xi1>
    %56 = vector.broadcast %55 : vector<1x8x8xi1> to vector<4x8x8xi1>
    %57 = vector.broadcast %cst_32 : f32 to vector<4x8x8xf32>
    %58 = arith.select %56, %50, %57 : vector<4x8x8xi1>, vector<4x8x8xf32>
    %cst_33 = arith.constant dense<0xFF800000> : vector<4x8xf32>
    %59 = vector.multi_reduction <maximumf>, %58, %cst_33 [2] : vector<4x8x8xf32> to vector<4x8xf32>
    %60 = vector.shape_cast %59 : vector<4x8xf32> to vector<4x8x1xf32>
    %61 = vector.broadcast %60 : vector<4x8x1xf32> to vector<4x8x8xf32>
    %62 = arith.subf %58, %61 : vector<4x8x8xf32>
    %63 = math.exp %62 : vector<4x8x8xf32>
    %cst_34 = arith.constant dense<0.000000e+00> : vector<4x8xf32>
    %64 = vector.multi_reduction <add>, %63, %cst_34 [2] : vector<4x8x8xf32> to vector<4x8xf32>
    %65 = vector.shape_cast %64 : vector<4x8xf32> to vector<4x8x1xf32>
    %66 = tpu.reciprocal %65 {approx = true} : vector<4x8x1xf32> -> vector<4x8x1xf32>
    %67 = vector.broadcast %66 : vector<4x8x1xf32> to vector<4x8x8xf32>
    %68 = arith.mulf %63, %67 : vector<4x8x8xf32>
    %69 = arith.truncf %68 : vector<4x8x8xf32> to vector<4x8x8xbf16>
    %70 = arith.truncf %47 : vector<4x8x8xf32> to vector<4x8x8xbf16>
    "tpu.trace_start"() <{level = 10 : i32, message = "hqk,hkd->hqd"}> : () -> ()
    %cst_35 = arith.constant dense<0.000000e+00> : vector<4x8x8xf32>
    %71 = tpu.matmul %69, %70, %cst_35 {dimension_numbers = #tpu.dot_dimension_numbers<[2], [1], [1], [2], [0, 0, 0, 1, 1, 2], [0], [0]>} : vector<4x8x8xbf16>, vector<4x8x8xbf16>, vector<4x8x8xf32> -> vector<4x8x8xf32>
    "tpu.trace_stop"() : () -> ()
    %72 = arith.truncf %71 : vector<4x8x8xf32> to vector<4x8x8xbf16>
    %c0_36 = arith.constant 0 : index
    %c0_37 = arith.constant 0 : index
    %c0_38 = arith.constant 0 : index
    %73 = vector.load %arg10[%c0_36, %c0_37, %c0_38] : memref<4x8x32xbf16, #tpu.memory_space<vmem>>, vector<4x8x32xbf16>
    "tpu.trace_start"() <{level = 10 : i32, message = "hsd,hdo->hso"}> : () -> ()
    %cst_39 = arith.constant dense<0.000000e+00> : vector<4x8x32xf32>
    %74 = tpu.matmul %72, %73, %cst_39 {dimension_numbers = #tpu.dot_dimension_numbers<[2], [1], [1], [2], [0, 0, 0, 1, 1, 2], [0], [0]>} : vector<4x8x8xbf16>, vector<4x8x32xbf16>, vector<4x8x32xf32> -> vector<4x8x32xf32>
    "tpu.trace_stop"() : () -> ()
    %cst_40 = arith.constant dense<0.000000e+00> : vector<8x32xf32>
    %75 = vector.multi_reduction <add>, %74, %cst_40 [0] : vector<4x8x32xf32> to vector<8x32xf32>
    %c0_41 = arith.constant 0 : index
    %c0_42 = arith.constant 0 : index
    %76 = vector.load %arg11[%c0_41, %c0_42] : memref<1x32xf32, #tpu.memory_space<vmem>>, vector<1x32xf32>
    %77 = vector.shape_cast %76 : vector<1x32xf32> to vector<32xf32>
    %78 = vector.shape_cast %77 : vector<32xf32> to vector<1x32xf32>
    %79 = vector.broadcast %78 : vector<1x32xf32> to vector<8x32xf32>
    %80 = arith.addf %75, %79 : vector<8x32xf32>
    %81 = arith.addf %1, %80 : vector<8x32xf32>
    %c0_43 = arith.constant 0 : index
    %c0_44 = arith.constant 0 : index
    %82 = vector.load %arg12[%c0_43, %c0_44] : memref<1x32xf32, #tpu.memory_space<vmem>>, vector<1x32xf32>
    %83 = vector.shape_cast %82 : vector<1x32xf32> to vector<32xf32>
    %c0_45 = arith.constant 0 : index
    %c0_46 = arith.constant 0 : index
    %84 = vector.load %arg13[%c0_45, %c0_46] : memref<1x32xf32, #tpu.memory_space<vmem>>, vector<1x32xf32>
    %85 = vector.shape_cast %84 : vector<1x32xf32> to vector<32xf32>
    %cst_47 = arith.constant dense<0.000000e+00> : vector<8xf32>
    %86 = vector.multi_reduction <add>, %81, %cst_47 [1] : vector<8x32xf32> to vector<8xf32>
    %87 = vector.shape_cast %86 : vector<8xf32> to vector<8x1xf32>
    %cst_48 = arith.constant 3.200000e+01 : f32
    %88 = vector.broadcast %cst_48 : f32 to vector<8x1xf32>
    %89 = arith.divf %87, %88 : vector<8x1xf32>
    %90 = vector.broadcast %89 : vector<8x1xf32> to vector<8x32xf32>
    %91 = arith.subf %81, %90 : vector<8x32xf32>
    %92 = arith.mulf %91, %91 : vector<8x32xf32>
    %cst_49 = arith.constant dense<0.000000e+00> : vector<8xf32>
    %93 = vector.multi_reduction <add>, %92, %cst_49 [1] : vector<8x32xf32> to vector<8xf32>
    %94 = vector.shape_cast %93 : vector<8xf32> to vector<8x1xf32>
    %cst_50 = arith.constant 3.200000e+01 : f32
    %95 = vector.broadcast %cst_50 : f32 to vector<8x1xf32>
    %96 = arith.divf %94, %95 : vector<8x1xf32>
    %97 = vector.broadcast %89 : vector<8x1xf32> to vector<8x32xf32>
    %98 = arith.subf %81, %97 : vector<8x32xf32>
    %cst_51 = arith.constant 9.99999974E-6 : f32
    %99 = vector.broadcast %cst_51 : f32 to vector<8x1xf32>
    %100 = arith.addf %96, %99 : vector<8x1xf32>
    %101 = math.rsqrt %100 : vector<8x1xf32>
    %102 = vector.broadcast %101 : vector<8x1xf32> to vector<8x32xf32>
    %103 = arith.mulf %98, %102 : vector<8x32xf32>
    %104 = vector.shape_cast %83 : vector<32xf32> to vector<1x32xf32>
    %105 = vector.broadcast %104 : vector<1x32xf32> to vector<8x32xf32>
    %106 = arith.mulf %103, %105 : vector<8x32xf32>
    %107 = vector.shape_cast %85 : vector<32xf32> to vector<1x32xf32>
    %108 = vector.broadcast %107 : vector<1x32xf32> to vector<8x32xf32>
    %109 = arith.addf %106, %108 : vector<8x32xf32>
    %110 = arith.truncf %109 : vector<8x32xf32> to vector<8x32xbf16>
    %c0_52 = arith.constant 0 : index
    %c0_53 = arith.constant 0 : index
    %111 = vector.load %arg14[%c0_52, %c0_53] : memref<32x128xbf16, #tpu.memory_space<vmem>>, vector<32x128xbf16>
    %cst_54 = arith.constant dense<0.000000e+00> : vector<8x128xf32>
    %112 = tpu.matmul %110, %111, %cst_54 {dimension_numbers = #tpu.dot_dimension_numbers<[1], [0], [0], [1], [0, 0, 1, 1], [], []>} : vector<8x32xbf16>, vector<32x128xbf16>, vector<8x128xf32> -> vector<8x128xf32>
    %c0_55 = arith.constant 0 : index
    %c0_56 = arith.constant 0 : index
    %113 = vector.load %arg15[%c0_55, %c0_56] : memref<1x128xf32, #tpu.memory_space<vmem>>, vector<1x128xf32>
    %114 = vector.shape_cast %113 : vector<1x128xf32> to vector<128xf32>
    %115 = vector.shape_cast %114 : vector<128xf32> to vector<1x128xf32>
    %116 = vector.broadcast %115 : vector<1x128xf32> to vector<8x128xf32>
    %117 = arith.addf %112, %116 : vector<8x128xf32>
    %cst_57 = arith.constant 5.000000e-01 : f32
    %118 = vector.broadcast %cst_57 : f32 to vector<8x128xf32>
    %119 = arith.mulf %118, %117 : vector<8x128xf32>
    %cst_58 = arith.constant 4.471500e-02 : f32
    %120 = vector.broadcast %cst_58 : f32 to vector<8x128xf32>
    %121 = arith.mulf %120, %117 : vector<8x128xf32>
    %122 = arith.mulf %121, %117 : vector<8x128xf32>
    %123 = arith.mulf %122, %117 : vector<8x128xf32>
    %124 = arith.addf %117, %123 : vector<8x128xf32>
    %cst_59 = arith.constant 0.797884583 : f32
    %125 = vector.broadcast %cst_59 : f32 to vector<8x128xf32>
    %126 = arith.mulf %125, %124 : vector<8x128xf32>
    %127 = math.tanh %126 : vector<8x128xf32>
    %cst_60 = arith.constant 1.000000e+00 : f32
    %128 = vector.broadcast %cst_60 : f32 to vector<8x128xf32>
    %129 = arith.addf %128, %127 : vector<8x128xf32>
    %130 = arith.mulf %119, %129 : vector<8x128xf32>
    %131 = arith.truncf %130 : vector<8x128xf32> to vector<8x128xbf16>
    %c0_61 = arith.constant 0 : index
    %c0_62 = arith.constant 0 : index
    %132 = vector.load %arg16[%c0_61, %c0_62] : memref<128x32xbf16, #tpu.memory_space<vmem>>, vector<128x32xbf16>
    %cst_63 = arith.constant dense<0.000000e+00> : vector<8x32xf32>
    %133 = tpu.matmul %131, %132, %cst_63 {dimension_numbers = #tpu.dot_dimension_numbers<[1], [0], [0], [1], [0, 0, 1, 1], [], []>} : vector<8x128xbf16>, vector<128x32xbf16>, vector<8x32xf32> -> vector<8x32xf32>
    %c0_64 = arith.constant 0 : index
    %c0_65 = arith.constant 0 : index
    %134 = vector.load %arg17[%c0_64, %c0_65] : memref<1x32xf32, #tpu.memory_space<vmem>>, vector<1x32xf32>
    %135 = vector.shape_cast %134 : vector<1x32xf32> to vector<32xf32>
    %136 = vector.shape_cast %135 : vector<32xf32> to vector<1x32xf32>
    %137 = vector.broadcast %136 : vector<1x32xf32> to vector<8x32xf32>
    %138 = arith.addf %133, %137 : vector<8x32xf32>
    %139 = arith.addf %81, %138 : vector<8x32xf32>
    %140 = arith.truncf %139 : vector<8x32xf32> to vector<8x32xbf16>
    %c0_66 = arith.constant 0 : index
    %c0_67 = arith.constant 0 : index
    %141 = vector.load %arg18[%c0_66, %c0_67] : memref<32x128xbf16, #tpu.memory_space<vmem>>, vector<32x128xbf16>
    %cst_68 = arith.constant dense<0.000000e+00> : vector<8x128xf32>
    %142 = tpu.matmul %140, %141, %cst_68 {dimension_numbers = #tpu.dot_dimension_numbers<[1], [0], [0], [1], [0, 0, 1, 1], [], []>} : vector<8x32xbf16>, vector<32x128xbf16>, vector<8x128xf32> -> vector<8x128xf32>
    %c0_69 = arith.constant 0 : index
    %c0_70 = arith.constant 0 : index
    %143 = vector.load %arg19[%c0_69, %c0_70] : memref<1x128xf32, #tpu.memory_space<vmem>>, vector<1x128xf32>
    %144 = vector.shape_cast %143 : vector<1x128xf32> to vector<128xf32>
    %145 = vector.shape_cast %144 : vector<128xf32> to vector<1x128xf32>
    %146 = vector.broadcast %145 : vector<1x128xf32> to vector<8x128xf32>
    %147 = arith.addf %142, %146 : vector<8x128xf32>
    %cst_71 = arith.constant 5.000000e-01 : f32
    %148 = vector.broadcast %cst_71 : f32 to vector<8x128xf32>
    %149 = arith.mulf %148, %147 : vector<8x128xf32>
    %cst_72 = arith.constant 4.471500e-02 : f32
    %150 = vector.broadcast %cst_72 : f32 to vector<8x128xf32>
    %151 = arith.mulf %150, %147 : vector<8x128xf32>
    %152 = arith.mulf %151, %147 : vector<8x128xf32>
    %153 = arith.mulf %152, %147 : vector<8x128xf32>
    %154 = arith.addf %147, %153 : vector<8x128xf32>
    %cst_73 = arith.constant 0.797884583 : f32
    %155 = vector.broadcast %cst_73 : f32 to vector<8x128xf32>
    %156 = arith.mulf %155, %154 : vector<8x128xf32>
    %157 = math.tanh %156 : vector<8x128xf32>
    %cst_74 = arith.constant 1.000000e+00 : f32
    %158 = vector.broadcast %cst_74 : f32 to vector<8x128xf32>
    %159 = arith.addf %158, %157 : vector<8x128xf32>
    %160 = arith.mulf %149, %159 : vector<8x128xf32>
    %161 = arith.truncf %160 : vector<8x128xf32> to vector<8x128xbf16>
    %c0_75 = arith.constant 0 : index
    %c0_76 = arith.constant 0 : index
    %162 = vector.load %arg20[%c0_75, %c0_76] : memref<128x32xbf16, #tpu.memory_space<vmem>>, vector<128x32xbf16>
    %cst_77 = arith.constant dense<0.000000e+00> : vector<8x32xf32>
    %163 = tpu.matmul %161, %162, %cst_77 {dimension_numbers = #tpu.dot_dimension_numbers<[1], [0], [0], [1], [0, 0, 1, 1], [], []>} : vector<8x128xbf16>, vector<128x32xbf16>, vector<8x32xf32> -> vector<8x32xf32>
    %c0_78 = arith.constant 0 : index
    %c0_79 = arith.constant 0 : index
    %164 = vector.load %arg21[%c0_78, %c0_79] : memref<1x32xf32, #tpu.memory_space<vmem>>, vector<1x32xf32>
    %165 = vector.shape_cast %164 : vector<1x32xf32> to vector<32xf32>
    %166 = vector.shape_cast %165 : vector<32xf32> to vector<1x32xf32>
    %167 = vector.broadcast %166 : vector<1x32xf32> to vector<8x32xf32>
    %168 = arith.addf %163, %167 : vector<8x32xf32>
    %169 = arith.addf %139, %168 : vector<8x32xf32>
    %c0_80 = arith.constant 0 : index
    %c0_81 = arith.constant 0 : index
    %c0_82 = arith.constant 0 : index
    %170 = vector.load %arg22[%c0_80, %c0_81, %c0_82] : memref<1x8x32xf32, #tpu.memory_space<vmem>>, vector<1x8x32xf32>
    %171 = vector.shape_cast %170 : vector<1x8x32xf32> to vector<8x32xf32>
    %172 = vector.shape_cast %169 : vector<8x32xf32> to vector<1x8x32xf32>
    tpu.vector_store %arg22[%c0_80, %c0_81, %c0_82], %172 {strides = array<i32>} : memref<1x8x32xf32, #tpu.memory_space<vmem>>, vector<1x8x32xf32>,
    return
  }
  func.func @transform_0(%arg0: i32) -> (i32, i32, i32) {
    %c0_i32 = arith.constant 0 : i32
    %c0_i32_0 = arith.constant 0 : i32
    %c0_i32_1 = arith.constant 0 : i32
    return %arg0, %c0_i32, %c0_i32_0 : i32, i32, i32
  }
  func.func @transform_1(%arg0: i32) -> (i32, i32) {
    %c0_i32 = arith.constant 0 : i32
    %c0_i32_0 = arith.constant 0 : i32
    %c0_i32_1 = arith.constant 0 : i32
    return %c0_i32, %c0_i32_0 : i32, i32
  }
  func.func @transform_2(%arg0: i32) -> (i32, i32) {
    %c0_i32 = arith.constant 0 : i32
    %c0_i32_0 = arith.constant 0 : i32
    %c0_i32_1 = arith.constant 0 : i32
    return %c0_i32, %c0_i32_0 : i32, i32
  }
  func.func @transform_3(%arg0: i32) -> (i32, i32, i32) {
    %c0_i32 = arith.constant 0 : i32
    %c0_i32_0 = arith.constant 0 : i32
    %c0_i32_1 = arith.constant 0 : i32
    %c0_i32_2 = arith.constant 0 : i32
    return %c0_i32, %c0_i32_0, %c0_i32_1 : i32, i32, i32
  }
  func.func @transform_4(%arg0: i32) -> (i32, i32, i32) {
    %c0_i32 = arith.constant 0 : i32
    %c0_i32_0 = arith.constant 0 : i32
    %c0_i32_1 = arith.constant 0 : i32
    %c0_i32_2 = arith.constant 0 : i32
    return %c0_i32, %c0_i32_0, %c0_i32_1 : i32, i32, i32
  }
  func.func @transform_5(%arg0: i32) -> (i32, i32, i32) {
    %c0_i32 = arith.constant 0 : i32
    %c0_i32_0 = arith.constant 0 : i32
    %c0_i32_1 = arith.constant 0 : i32
    %c0_i32_2 = arith.constant 0 : i32
    return %c0_i32, %c0_i32_0, %c0_i32_1 : i32, i32, i32
  }
  func.func @transform_6(%arg0: i32) -> (i32, i32, i32) {
    %c0_i32 = arith.constant 0 : i32
    %c0_i32_0 = arith.constant 0 : i32
    %c0_i32_1 = arith.constant 0 : i32
    %c0_i32_2 = arith.constant 0 : i32
    return %c0_i32, %c0_i32_0, %c0_i32_1 : i32, i32, i32
  }
  func.func @transform_7(%arg0: i32) -> (i32, i32, i32) {
    %c0_i32 = arith.constant 0 : i32
    %c0_i32_0 = arith.constant 0 : i32
    %c0_i32_1 = arith.constant 0 : i32
    %c0_i32_2 = arith.constant 0 : i32
    return %c0_i32, %c0_i32_0, %c0_i32_1 : i32, i32, i32
  }
  func.func @transform_8(%arg0: i32) -> (i32, i32, i32) {
    %c0_i32 = arith.constant 0 : i32
    %c0_i32_0 = arith.constant 0 : i32
    %c0_i32_1 = arith.constant 0 : i32
    %c0_i32_2 = arith.constant 0 : i32
    return %c0_i32, %c0_i32_0, %c0_i32_1 : i32, i32, i32
  }
  func.func @transform_9(%arg0: i32) -> (i32, i32, i32) {
    %c0_i32 = arith.constant 0 : i32
    %c0_i32_0 = arith.constant 0 : i32
    %c0_i32_1 = arith.constant 0 : i32
    %c0_i32_2 = arith.constant 0 : i32
    return %c0_i32, %c0_i32_0, %c0_i32_1 : i32, i32, i32
  }
  func.func @transform_10(%arg0: i32) -> (i32, i32) {
    %c0_i32 = arith.constant 0 : i32
    %c0_i32_0 = arith.constant 0 : i32
    %c0_i32_1 = arith.constant 0 : i32
    return %c0_i32, %c0_i32_0 : i32, i32
  }
  func.func @transform_11(%arg0: i32) -> (i32, i32) {
    %c0_i32 = arith.constant 0 : i32
    %c0_i32_0 = arith.constant 0 : i32
    %c0_i32_1 = arith.constant 0 : i32
    return %c0_i32, %c0_i32_0 : i32, i32
  }
  func.func @transform_12(%arg0: i32) -> (i32, i32) {
    %c0_i32 = arith.constant 0 : i32
    %c0_i32_0 = arith.constant 0 : i32
    %c0_i32_1 = arith.constant 0 : i32
    return %c0_i32, %c0_i32_0 : i32, i32
  }
  func.func @transform_13(%arg0: i32) -> (i32, i32) {
    %c0_i32 = arith.constant 0 : i32
    %c0_i32_0 = arith.constant 0 : i32
    %c0_i32_1 = arith.constant 0 : i32
    return %c0_i32, %c0_i32_0 : i32, i32
  }
  func.func @transform_14(%arg0: i32) -> (i32, i32) {
    %c0_i32 = arith.constant 0 : i32
    %c0_i32_0 = arith.constant 0 : i32
    %c0_i32_1 = arith.constant 0 : i32
    return %c0_i32, %c0_i32_0 : i32, i32
  }
  func.func @transform_15(%arg0: i32) -> (i32, i32) {
    %c0_i32 = arith.constant 0 : i32
    %c0_i32_0 = arith.constant 0 : i32
    %c0_i32_1 = arith.constant 0 : i32
    return %c0_i32, %c0_i32_0 : i32, i32
  }
  func.func @transform_16(%arg0: i32) -> (i32, i32) {
    %c0_i32 = arith.constant 0 : i32
    %c0_i32_0 = arith.constant 0 : i32
    %c0_i32_1 = arith.constant 0 : i32
    return %c0_i32, %c0_i32_0 : i32, i32
  }
  func.func @transform_17(%arg0: i32) -> (i32, i32) {
    %c0_i32 = arith.constant 0 : i32
    %c0_i32_0 = arith.constant 0 : i32
    %c0_i32_1 = arith.constant 0 : i32
    return %c0_i32, %c0_i32_0 : i32, i32
  }
  func.func @transform_18(%arg0: i32) -> (i32, i32) {
    %c0_i32 = arith.constant 0 : i32
    %c0_i32_0 = arith.constant 0 : i32
    %c0_i32_1 = arith.constant 0 : i32
    return %c0_i32, %c0_i32_0 : i32, i32
  }
  func.func @transform_19(%arg0: i32) -> (i32, i32) {
    %c0_i32 = arith.constant 0 : i32
    %c0_i32_0 = arith.constant 0 : i32
    %c0_i32_1 = arith.constant 0 : i32
    return %c0_i32, %c0_i32_0 : i32, i32
  }
  func.func @transform_20(%arg0: i32) -> (i32, i32) {
    %c0_i32 = arith.constant 0 : i32
    %c0_i32_0 = arith.constant 0 : i32
    %c0_i32_1 = arith.constant 0 : i32
    return %c0_i32, %c0_i32_0 : i32, i32
  }
  func.func @transform_21(%arg0: i32) -> (i32, i32, i32) {
    %c0_i32 = arith.constant 0 : i32
    %c0_i32_0 = arith.constant 0 : i32
    %c0_i32_1 = arith.constant 0 : i32
    return %arg0, %c0_i32, %c0_i32_0 : i32, i32, i32
  }
}

</mosaic_0001>

<llo_original>
// kernel: tpu_custom_call.1
$region0: #{tpu_custom_call.1}
  #allocation0 [shape = 'u32[]', space=smem, size = 0x4, offset = 0x4, fixed_abs, tag = 'smem constant byte address 0x4 - core index']
  #allocation1 [shape = 'u32[72,128]{1,0:T(1,128)}', space=vmem, size = 0x9000, scoped, tag = 'internal scratch']
  %s0 = inlined_call_operand.vmem [shape: f32[2,8,32], index: 0, kind: input, shape index: {}]
  %s1 = inlined_call_operand.vmem [shape: f32[1,32], index: 1, kind: input, shape index: {}]
  %s2 = inlined_call_operand.vmem [shape: f32[1,32], index: 2, kind: input, shape index: {}]
  %s3 = inlined_call_operand.vmem [shape: bf16[4,32,8], index: 3, kind: input, shape index: {}]
  %s4 = inlined_call_operand.vmem [shape: f32[4,1,8], index: 4, kind: input, shape index: {}]
  %s5 = inlined_call_operand.vmem [shape: bf16[4,32,8], index: 5, kind: input, shape index: {}]
  %s6 = inlined_call_operand.vmem [shape: f32[4,1,8], index: 6, kind: input, shape index: {}]
  %s7 = inlined_call_operand.vmem [shape: bf16[4,32,8], index: 7, kind: input, shape index: {}]
  %s8 = inlined_call_operand.vmem [shape: f32[4,1,8], index: 8, kind: input, shape index: {}]
  %s9 = inlined_call_operand.vmem [shape: bf16[4,8,32], index: 9, kind: input, shape index: {}]
  %s10 = inlined_call_operand.vmem [shape: f32[1,32], index: 10, kind: input, shape index: {}]
  %s11 = inlined_call_operand.vmem [shape: f32[1,32], index: 11, kind: input, shape index: {}]
  %s12 = inlined_call_operand.vmem [shape: f32[1,32], index: 12, kind: input, shape index: {}]
  %s13 = inlined_call_operand.vmem [shape: bf16[32,128], index: 13, kind: input, shape index: {}]
  %s14 = inlined_call_operand.vmem [shape: f32[1,128], index: 14, kind: input, shape index: {}]
  %s15 = inlined_call_operand.vmem [shape: bf16[128,32], index: 15, kind: input, shape index: {}]
  %s16 = inlined_call_operand.vmem [shape: f32[1,32], index: 16, kind: input, shape index: {}]
  %s17 = inlined_call_operand.vmem [shape: bf16[32,128], index: 17, kind: input, shape index: {}]
  %s18 = inlined_call_operand.vmem [shape: f32[1,128], index: 18, kind: input, shape index: {}]
  %s19 = inlined_call_operand.vmem [shape: bf16[128,32], index: 19, kind: input, shape index: {}]
  %s20 = inlined_call_operand.vmem [shape: f32[1,32], index: 20, kind: input, shape index: {}]
  %s21 = inlined_call_operand.hbm [shape: f32[2,8,32], index: 21, kind: output, shape index: {}]
  %s22 = sld [smem:[#allocation0]]
  $region117: #{tpu_custom_call.1} parent=0
    _
  %s24 = ssub.s32 1, %s22
  %s25 = scalar_select 0, %s24, %s22
  $region1: #{tpu_custom_call.1} parent=0
    #allocation2 [shape = 'u8[8192]{0}', space=vmem, size = 0x2000, scoped, tag = 'output window, operand 0']
    #allocation3 [shape = 's32[2]{0}', space=sflag, size = 0x8, scoped, tag = 'scoped memory for tpu_custom_call.1']
    %26 = vsyncpa [#allocation3], 0
    %s27 = scalar_lea.sflag [#allocation3], 1
    %28 = vsyncpa %s27, 0
    loop: start=0, step=1, limit=4
    $region2: #{tpu_custom_call.1} parent=1 // loop_pre_header
      _
    $region3: #{tpu_custom_call.1} parent=1 // loop_header
      %s30 = sphi 0, %s34
      %p31 = scmp.ge.s32.totalorder %s30, 4
      %s40 = sphi 0, %s42
      %s43 = sphi 0, %s40
      %s44 = sphi 0, %s43
      %s60 = sphi 0, %s44
      %s64 = sphi 0, %s64
      %s66 = sphi 0, %s64
      %s67 = sphi 0, %s66
      %s81 = sphi 0, %s67
      %s85 = sphi 0, %s85
      %s87 = sphi 0, %s85
      %s88 = sphi 0, %s87
      %s102 = sphi 0, %s88
      %s106 = sphi 0, %s106
      %s108 = sphi 0, %s106
      %s109 = sphi 0, %s108
      %s123 = sphi 0, %s109
      %s127 = sphi 0, %s127
      %s129 = sphi 0, %s127
      %s130 = sphi 0, %s129
      %s144 = sphi 0, %s130
      %s148 = sphi 0, %s148
      %s150 = sphi 0, %s148
      %s151 = sphi 0, %s150
      %s165 = sphi 0, %s151
      %s169 = sphi 0, %s169
      %s171 = sphi 0, %s169
      %s172 = sphi 0, %s171
      %s186 = sphi 0, %s172
      %s190 = sphi 0, %s190
      %s192 = sphi 0, %s190
      %s193 = sphi 0, %s192
      %s207 = sphi 0, %s193
      %s211 = sphi 0, %s211
      %s213 = sphi 0, %s211
      %s214 = sphi 0, %s213
      %s228 = sphi 0, %s214
      %s232 = sphi 0, %s232
      %s234 = sphi 0, %s232
      %s235 = sphi 0, %s234
      %s249 = sphi 0, %s235
      %s253 = sphi 0, %s253
      %s255 = sphi 0, %s253
      %s256 = sphi 0, %s255
      %s270 = sphi 0, %s256
      %s274 = sphi 0, %s274
      %s276 = sphi 0, %s274
      %s277 = sphi 0, %s276
      %s291 = sphi 0, %s277
      %s295 = sphi 0, %s295
      %s297 = sphi 0, %s295
      %s298 = sphi 0, %s297
      %s312 = sphi 0, %s298
      %s316 = sphi 0, %s316
      %s318 = sphi 0, %s316
      %s319 = sphi 0, %s318
      %s333 = sphi 0, %s319
      %s337 = sphi 0, %s337
      %s339 = sphi 0, %s337
      %s340 = sphi 0, %s339
      %s354 = sphi 0, %s340
      %s358 = sphi 0, %s358
      %s360 = sphi 0, %s358
      %s361 = sphi 0, %s360
      %s375 = sphi 0, %s361
      %s379 = sphi 0, %s379
      %s381 = sphi 0, %s379
      %s382 = sphi 0, %s381
      %s396 = sphi 0, %s382
      %s400 = sphi 0, %s400
      %s402 = sphi 0, %s400
      %s403 = sphi 0, %s402
      %s417 = sphi 0, %s403
      %s421 = sphi 0, %s421
      %s423 = sphi 0, %s421
      %s424 = sphi 0, %s423
      %s438 = sphi 0, %s424
      %s442 = sphi 0, %s442
      %s444 = sphi 0, %s442
      %s445 = sphi 0, %s444
      %s459 = sphi 0, %s445
      %s463 = sphi 0, %s463
      %s465 = sphi 0, %s463
      %s466 = sphi 0, %s465
      %s480 = sphi 0, %s466
      %s486 = sphi 0, %s488
      %s489 = sphi 0, %s486
      %s490 = sphi 0, %s489
      %s506 = sphi 0, %s490
    $region4: #{tpu_custom_call.1} parent=1 // loop_header_branch
      %33 = sbr.rel (%p31) target = $region8
    $region5: #{tpu_custom_call.1} parent=1 // loop_body
      %s35 = ssub.s32 %s30, 1
      %s36 = ssub.s32 %s30, 2
      %s37 = sadd.s32 %s30, 1
      %s38 = ssub.s32 %s30, %s37
      %p39 = scmp.eq.s32.totalorder %s38, 0
      %s41 = sadd.s32 %s40, 1
      %s42 = scalar_select %p39, %s40, %s41
      %p45 = pneg %p39
      %p46 = scmp.eq.s32.totalorder %s30, 1
      %p47 = por %p45, %p46
      %p48 = scmp.ne.s32.totalorder %s40, %s43
      %p49 = scmp.eq.s32.totalorder %s30, 0
      %p50 = por %p48, %p49
      %p51 = scmp.ne.s32.totalorder %s40, %s43
      %p52 = scmp.eq.s32.totalorder %s35, 1
      %p53 = por %p51, %p52
      %p54 = scmp.ne.s32.totalorder %s43, %s44
      %p55 = scmp.eq.s32.totalorder %s35, 0
      %p56 = por %p54, %p55
      %p57 = scmp.ne.s32.totalorder %s43, %s44
      %p58 = scmp.eq.s32.totalorder %s36, 1
      %p59 = por %p57, %p58
      %p61 = scmp.ne.s32.totalorder %s44, %s60
      %p62 = scmp.eq.s32.totalorder %s36, 0
      %p63 = por %p61, %p62
      %s65 = sadd.s32 %s64, 1
      %p68 = scmp.eq.s32.totalorder %s30, 1
      %p69 = scmp.ne.s32.totalorder %s64, %s66
      %p70 = scmp.eq.s32.totalorder %s30, 0
      %p71 = por %p69, %p70
      %p72 = scmp.ne.s32.totalorder %s64, %s66
      %p73 = scmp.eq.s32.totalorder %s35, 1
      %p74 = por %p72, %p73
      %p75 = scmp.ne.s32.totalorder %s66, %s67
      %p76 = scmp.eq.s32.totalorder %s35, 0
      %p77 = por %p75, %p76
      %p78 = scmp.ne.s32.totalorder %s66, %s67
      %p79 = scmp.eq.s32.totalorder %s36, 1
      %p80 = por %p78, %p79
      %p82 = scmp.ne.s32.totalorder %s67, %s81
      %p83 = scmp.eq.s32.totalorder %s36, 0
      %p84 = por %p82, %p83
      %s86 = sadd.s32 %s85, 1
      %p89 = scmp.eq.s32.totalorder %s30, 1
      %p90 = scmp.ne.s32.totalorder %s85, %s87
      %p91 = scmp.eq.s32.totalorder %s30, 0
      %p92 = por %p90, %p91
      %p93 = scmp.ne.s32.totalorder %s85, %s87
      %p94 = scmp.eq.s32.totalorder %s35, 1
      %p95 = por %p93, %p94
      %p96 = scmp.ne.s32.totalorder %s87, %s88
      %p97 = scmp.eq.s32.totalorder %s35, 0
      %p98 = por %p96, %p97
      %p99 = scmp.ne.s32.totalorder %s87, %s88
      %p100 = scmp.eq.s32.totalorder %s36, 1
      %p101 = por %p99, %p100
      %p103 = scmp.ne.s32.totalorder %s88, %s102
      %p104 = scmp.eq.s32.totalorder %s36, 0
      %p105 = por %p103, %p104
      %s107 = sadd.s32 %s106, 1
      %p110 = scmp.eq.s32.totalorder %s30, 1
      %p111 = scmp.ne.s32.totalorder %s106, %s108
      %p112 = scmp.eq.s32.totalorder %s30, 0
      %p113 = por %p111, %p112
      %p114 = scmp.ne.s32.totalorder %s106, %s108
      %p115 = scmp.eq.s32.totalorder %s35, 1
      %p116 = por %p114, %p115
      %p117 = scmp.ne.s32.totalorder %s108, %s109
      %p118 = scmp.eq.s32.totalorder %s35, 0
      %p119 = por %p117, %p118
      %p120 = scmp.ne.s32.totalorder %s108, %s109
      %p121 = scmp.eq.s32.totalorder %s36, 1
      %p122 = por %p120, %p121
      %p124 = scmp.ne.s32.totalorder %s109, %s123
      %p125 = scmp.eq.s32.totalorder %s36, 0
      %p126 = por %p124, %p125
      %s128 = sadd.s32 %s127, 1
      %p131 = scmp.eq.s32.totalorder %s30, 1
      %p132 = scmp.ne.s32.totalorder %s127, %s129
      %p133 = scmp.eq.s32.totalorder %s30, 0
      %p134 = por %p132, %p133
      %p135 = scmp.ne.s32.totalorder %s127, %s129
      %p136 = scmp.eq.s32.totalorder %s35, 1
      %p137 = por %p135, %p136
      %p138 = scmp.ne.s32.totalorder %s129, %s130
      %p139 = scmp.eq.s32.totalorder %s35, 0
      %p140 = por %p138, %p139
      %p141 = scmp.ne.s32.totalorder %s129, %s130
      %p142 = scmp.eq.s32.totalorder %s36, 1
      %p143 = por %p141, %p142
      %p145 = scmp.ne.s32.totalorder %s130, %s144
      %p146 = scmp.eq.s32.totalorder %s36, 0
      %p147 = por %p145, %p146
      %s149 = sadd.s32 %s148, 1
      %p152 = scmp.eq.s32.totalorder %s30, 1
      %p153 = scmp.ne.s32.totalorder %s148, %s150
      %p154 = scmp.eq.s32.totalorder %s30, 0
      %p155 = por %p153, %p154
      %p156 = scmp.ne.s32.totalorder %s148, %s150
      %p157 = scmp.eq.s32.totalorder %s35, 1
      %p158 = por %p156, %p157
      %p159 = scmp.ne.s32.totalorder %s150, %s151
      %p160 = scmp.eq.s32.totalorder %s35, 0
      %p161 = por %p159, %p160
      %p162 = scmp.ne.s32.totalorder %s150, %s151
      %p163 = scmp.eq.s32.totalorder %s36, 1
      %p164 = por %p162, %p163
      %p166 = scmp.ne.s32.totalorder %s151, %s165
      %p167 = scmp.eq.s32.totalorder %s36, 0
      %p168 = por %p166, %p167
      %s170 = sadd.s32 %s169, 1
      %p173 = scmp.eq.s32.totalorder %s30, 1
      %p174 = scmp.ne.s32.totalorder %s169, %s171
      %p175 = scmp.eq.s32.totalorder %s30, 0
      %p176 = por %p174, %p175
      %p177 = scmp.ne.s32.totalorder %s169, %s171
      %p178 = scmp.eq.s32.totalorder %s35, 1
      %p179 = por %p177, %p178
      %p180 = scmp.ne.s32.totalorder %s171, %s172
      %p181 = scmp.eq.s32.totalorder %s35, 0
      %p182 = por %p180, %p181
      %p183 = scmp.ne.s32.totalorder %s171, %s172
      %p184 = scmp.eq.s32.totalorder %s36, 1
      %p185 = por %p183, %p184
      %p187 = scmp.ne.s32.totalorder %s172, %s186
      %p188 = scmp.eq.s32.totalorder %s36, 0
      %p189 = por %p187, %p188
      %s191 = sadd.s32 %s190, 1
      %p194 = scmp.eq.s32.totalorder %s30, 1
      %p195 = scmp.ne.s32.totalorder %s190, %s192
      %p196 = scmp.eq.s32.totalorder %s30, 0
      %p197 = por %p195, %p196
      %p198 = scmp.ne.s32.totalorder %s190, %s192
      %p199 = scmp.eq.s32.totalorder %s35, 1
      %p200 = por %p198, %p199
      %p201 = scmp.ne.s32.totalorder %s192, %s193
      %p202 = scmp.eq.s32.totalorder %s35, 0
      %p203 = por %p201, %p202
      %p204 = scmp.ne.s32.totalorder %s192, %s193
      %p205 = scmp.eq.s32.totalorder %s36, 1
      %p206 = por %p204, %p205
      %p208 = scmp.ne.s32.totalorder %s193, %s207
      %p209 = scmp.eq.s32.totalorder %s36, 0
      %p210 = por %p208, %p209
      %s212 = sadd.s32 %s211, 1
      %p215 = scmp.eq.s32.totalorder %s30, 1
      %p216 = scmp.ne.s32.totalorder %s211, %s213
      %p217 = scmp.eq.s32.totalorder %s30, 0
      %p218 = por %p216, %p217
      %p219 = scmp.ne.s32.totalorder %s211, %s213
      %p220 = scmp.eq.s32.totalorder %s35, 1
      %p221 = por %p219, %p220
      %p222 = scmp.ne.s32.totalorder %s213, %s214
      %p223 = scmp.eq.s32.totalorder %s35, 0
      %p224 = por %p222, %p223
      %p225 = scmp.ne.s32.totalorder %s213, %s214
      %p226 = scmp.eq.s32.totalorder %s36, 1
      %p227 = por %p225, %p226
      %p229 = scmp.ne.s32.totalorder %s214, %s228
      %p230 = scmp.eq.s32.totalorder %s36, 0
      %p231 = por %p229, %p230
      %s233 = sadd.s32 %s232, 1
      %p236 = scmp.eq.s32.totalorder %s30, 1
      %p237 = scmp.ne.s32.totalorder %s232, %s234
      %p238 = scmp.eq.s32.totalorder %s30, 0
      %p239 = por %p237, %p238
      %p240 = scmp.ne.s32.totalorder %s232, %s234
      %p241 = scmp.eq.s32.totalorder %s35, 1
      %p242 = por %p240, %p241
      %p243 = scmp.ne.s32.totalorder %s234, %s235
      %p244 = scmp.eq.s32.totalorder %s35, 0
      %p245 = por %p243, %p244
      %p246 = scmp.ne.s32.totalorder %s234, %s235
      %p247 = scmp.eq.s32.totalorder %s36, 1
      %p248 = por %p246, %p247
      %p250 = scmp.ne.s32.totalorder %s235, %s249
      %p251 = scmp.eq.s32.totalorder %s36, 0
      %p252 = por %p250, %p251
      %s254 = sadd.s32 %s253, 1
      %p257 = scmp.eq.s32.totalorder %s30, 1
      %p258 = scmp.ne.s32.totalorder %s253, %s255
      %p259 = scmp.eq.s32.totalorder %s30, 0
      %p260 = por %p258, %p259
      %p261 = scmp.ne.s32.totalorder %s253, %s255
      %p262 = scmp.eq.s32.totalorder %s35, 1
      %p263 = por %p261, %p262
      %p264 = scmp.ne.s32.totalorder %s255, %s256
      %p265 = scmp.eq.s32.totalorder %s35, 0
      %p266 = por %p264, %p265
      %p267 = scmp.ne.s32.totalorder %s255, %s256
      %p268 = scmp.eq.s32.totalorder %s36, 1
      %p269 = por %p267, %p268
      %p271 = scmp.ne.s32.totalorder %s256, %s270
      %p272 = scmp.eq.s32.totalorder %s36, 0
      %p273 = por %p271, %p272
      %s275 = sadd.s32 %s274, 1
      %p278 = scmp.eq.s32.totalorder %s30, 1
      %p279 = scmp.ne.s32.totalorder %s274, %s276
      %p280 = scmp.eq.s32.totalorder %s30, 0
      %p281 = por %p279, %p280
      %p282 = scmp.ne.s32.totalorder %s274, %s276
      %p283 = scmp.eq.s32.totalorder %s35, 1
      %p284 = por %p282, %p283
      %p285 = scmp.ne.s32.totalorder %s276, %s277
      %p286 = scmp.eq.s32.totalorder %s35, 0
      %p287 = por %p285, %p286
      %p288 = scmp.ne.s32.totalorder %s276, %s277
      %p289 = scmp.eq.s32.totalorder %s36, 1
      %p290 = por %p288, %p289
      %p292 = scmp.ne.s32.totalorder %s277, %s291
      %p293 = scmp.eq.s32.totalorder %s36, 0
      %p294 = por %p292, %p293
      %s296 = sadd.s32 %s295, 1
      %p299 = scmp.eq.s32.totalorder %s30, 1
      %p300 = scmp.ne.s32.totalorder %s295, %s297
      %p301 = scmp.eq.s32.totalorder %s30, 0
      %p302 = por %p300, %p301
      %p303 = scmp.ne.s32.totalorder %s295, %s297
      %p304 = scmp.eq.s32.totalorder %s35, 1
      %p305 = por %p303, %p304
      %p306 = scmp.ne.s32.totalorder %s297, %s298
      %p307 = scmp.eq.s32.totalorder %s35, 0
      %p308 = por %p306, %p307
      %p309 = scmp.ne.s32.totalorder %s297, %s298
      %p310 = scmp.eq.s32.totalorder %s36, 1
      %p311 = por %p309, %p310
      %p313 = scmp.ne.s32.totalorder %s298, %s312
      %p314 = scmp.eq.s32.totalorder %s36, 0
      %p315 = por %p313, %p314
      %s317 = sadd.s32 %s316, 1
      %p320 = scmp.eq.s32.totalorder %s30, 1
      %p321 = scmp.ne.s32.totalorder %s316, %s318
      %p322 = scmp.eq.s32.totalorder %s30, 0
      %p323 = por %p321, %p322
      %p324 = scmp.ne.s32.totalorder %s316, %s318
      %p325 = scmp.eq.s32.totalorder %s35, 1
      %p326 = por %p324, %p325
      %p327 = scmp.ne.s32.totalorder %s318, %s319
      %p328 = scmp.eq.s32.totalorder %s35, 0
      %p329 = por %p327, %p328
      %p330 = scmp.ne.s32.totalorder %s318, %s319
      %p331 = scmp.eq.s32.totalorder %s36, 1
      %p332 = por %p330, %p331
      %p334 = scmp.ne.s32.totalorder %s319, %s333
      %p335 = scmp.eq.s32.totalorder %s36, 0
      %p336 = por %p334, %p335
      %s338 = sadd.s32 %s337, 1
      %p341 = scmp.eq.s32.totalorder %s30, 1
      %p342 = scmp.ne.s32.totalorder %s337, %s339
      %p343 = scmp.eq.s32.totalorder %s30, 0
      %p344 = por %p342, %p343
      %p345 = scmp.ne.s32.totalorder %s337, %s339
      %p346 = scmp.eq.s32.totalorder %s35, 1
      %p347 = por %p345, %p346
      %p348 = scmp.ne.s32.totalorder %s339, %s340
      %p349 = scmp.eq.s32.totalorder %s35, 0
      %p350 = por %p348, %p349
      %p351 = scmp.ne.s32.totalorder %s339, %s340
      %p352 = scmp.eq.s32.totalorder %s36, 1
      %p353 = por %p351, %p352
      %p355 = scmp.ne.s32.totalorder %s340, %s354
      %p356 = scmp.eq.s32.totalorder %s36, 0
      %p357 = por %p355, %p356
      %s359 = sadd.s32 %s358, 1
      %p362 = scmp.eq.s32.totalorder %s30, 1
      %p363 = scmp.ne.s32.totalorder %s358, %s360
      %p364 = scmp.eq.s32.totalorder %s30, 0
      %p365 = por %p363, %p364
      %p366 = scmp.ne.s32.totalorder %s358, %s360
      %p367 = scmp.eq.s32.totalorder %s35, 1
      %p368 = por %p366, %p367
      %p369 = scmp.ne.s32.totalorder %s360, %s361
      %p370 = scmp.eq.s32.totalorder %s35, 0
      %p371 = por %p369, %p370
      %p372 = scmp.ne.s32.totalorder %s360, %s361
      %p373 = scmp.eq.s32.totalorder %s36, 1
      %p374 = por %p372, %p373
      %p376 = scmp.ne.s32.totalorder %s361, %s375
      %p377 = scmp.eq.s32.totalorder %s36, 0
      %p378 = por %p376, %p377
      %s380 = sadd.s32 %s379, 1
      %p383 = scmp.eq.s32.totalorder %s30, 1
      %p384 = scmp.ne.s32.totalorder %s379, %s381
      %p385 = scmp.eq.s32.totalorder %s30, 0
      %p386 = por %p384, %p385
      %p387 = scmp.ne.s32.totalorder %s379, %s381
      %p388 = scmp.eq.s32.totalorder %s35, 1
      %p389 = por %p387, %p388
      %p390 = scmp.ne.s32.totalorder %s381, %s382
      %p391 = scmp.eq.s32.totalorder %s35, 0
      %p392 = por %p390, %p391
      %p393 = scmp.ne.s32.totalorder %s381, %s382
      %p394 = scmp.eq.s32.totalorder %s36, 1
      %p395 = por %p393, %p394
      %p397 = scmp.ne.s32.totalorder %s382, %s396
      %p398 = scmp.eq.s32.totalorder %s36, 0
      %p399 = por %p397, %p398
      %s401 = sadd.s32 %s400, 1
      %p404 = scmp.eq.s32.totalorder %s30, 1
      %p405 = scmp.ne.s32.totalorder %s400, %s402
      %p406 = scmp.eq.s32.totalorder %s30, 0
      %p407 = por %p405, %p406
      %p408 = scmp.ne.s32.totalorder %s400, %s402
      %p409 = scmp.eq.s32.totalorder %s35, 1
      %p410 = por %p408, %p409
      %p411 = scmp.ne.s32.totalorder %s402, %s403
      %p412 = scmp.eq.s32.totalorder %s35, 0
      %p413 = por %p411, %p412
      %p414 = scmp.ne.s32.totalorder %s402, %s403
      %p415 = scmp.eq.s32.totalorder %s36, 1
      %p416 = por %p414, %p415
      %p418 = scmp.ne.s32.totalorder %s403, %s417
      %p419 = scmp.eq.s32.totalorder %s36, 0
      %p420 = por %p418, %p419
      %s422 = sadd.s32 %s421, 1
      %p425 = scmp.eq.s32.totalorder %s30, 1
      %p426 = scmp.ne.s32.totalorder %s421, %s423
      %p427 = scmp.eq.s32.totalorder %s30, 0
      %p428 = por %p426, %p427
      %p429 = scmp.ne.s32.totalorder %s421, %s423
      %p430 = scmp.eq.s32.totalorder %s35, 1
      %p431 = por %p429, %p430
      %p432 = scmp.ne.s32.totalorder %s423, %s424
      %p433 = scmp.eq.s32.totalorder %s35, 0
      %p434 = por %p432, %p433
      %p435 = scmp.ne.s32.totalorder %s423, %s424
      %p436 = scmp.eq.s32.totalorder %s36, 1
      %p437 = por %p435, %p436
      %p439 = scmp.ne.s32.totalorder %s424, %s438
      %p440 = scmp.eq.s32.totalorder %s36, 0
      %p441 = por %p439, %p440
      %s443 = sadd.s32 %s442, 1
      %p446 = scmp.eq.s32.totalorder %s30, 1
      %p447 = scmp.ne.s32.totalorder %s442, %s444
      %p448 = scmp.eq.s32.totalorder %s30, 0
      %p449 = por %p447, %p448
      %p450 = scmp.ne.s32.totalorder %s442, %s444
      %p451 = scmp.eq.s32.totalorder %s35, 1
      %p452 = por %p450, %p451
      %p453 = scmp.ne.s32.totalorder %s444, %s445
      %p454 = scmp.eq.s32.totalorder %s35, 0
      %p455 = por %p453, %p454
      %p456 = scmp.ne.s32.totalorder %s444, %s445
      %p457 = scmp.eq.s32.totalorder %s36, 1
      %p458 = por %p456, %p457
      %p460 = scmp.ne.s32.totalorder %s445, %s459
      %p461 = scmp.eq.s32.totalorder %s36, 0
      %p462 = por %p460, %p461
      %s464 = sadd.s32 %s463, 1
      %p467 = scmp.eq.s32.totalorder %s30, 1
      %p468 = scmp.ne.s32.totalorder %s463, %s465
      %p469 = scmp.eq.s32.totalorder %s30, 0
      %p470 = por %p468, %p469
      %p471 = scmp.ne.s32.totalorder %s463, %s465
      %p472 = scmp.eq.s32.totalorder %s35, 1
      %p473 = por %p471, %p472
      %p474 = scmp.ne.s32.totalorder %s465, %s466
      %p475 = scmp.eq.s32.totalorder %s35, 0
      %p476 = por %p474, %p475
      %p477 = scmp.ne.s32.totalorder %s465, %s466
      %p478 = scmp.eq.s32.totalorder %s36, 1
      %p479 = por %p477, %p478
      %p481 = scmp.ne.s32.totalorder %s466, %s480
      %p482 = scmp.eq.s32.totalorder %s36, 0
      %p483 = por %p481, %p482
      %s484 = ssub.s32 %s30, %s37
      %p485 = scmp.eq.s32.totalorder %s484, 0
      %s487 = sadd.s32 %s486, 1
      %s488 = scalar_select %p485, %s486, %s487
      %p491 = pneg %p485
      %p492 = scmp.eq.s32.totalorder %s30, 1
      %p493 = por %p491, %p492
      %p494 = scmp.ne.s32.totalorder %s486, %s489
      %p495 = scmp.eq.s32.totalorder %s30, 0
      %p496 = por %p494, %p495
      %p497 = scmp.ne.s32.totalorder %s486, %s489
      %p498 = scmp.eq.s32.totalorder %s35, 1
      %p499 = por %p497, %p498
      %p500 = scmp.ne.s32.totalorder %s489, %s490
      %p501 = scmp.eq.s32.totalorder %s35, 0
      %p502 = por %p500, %p501
      %p503 = scmp.ne.s32.totalorder %s489, %s490
      %p504 = scmp.eq.s32.totalorder %s36, 1
      %p505 = por %p503, %p504
      %p507 = scmp.ne.s32.totalorder %s490, %s506
      %p508 = scmp.eq.s32.totalorder %s36, 0
      %p509 = por %p507, %p508
      %p510 = scmp.le.s32.totalorder 1, %s30
      %p511 = scmp.lt.s32.totalorder %s30, 3
      %p512 = pnand %p510, %p511
      %p513 = pneg %p512
      // Predicated region
      $region9: #{tpu_custom_call.1} parent=5 // pred_check
        _
      $region10: #{tpu_custom_call.1} parent=5 // pred_check_branch
        %515 = sbr.rel (%p512) target = $region12
      $region11: #{tpu_custom_call.1} parent=5 // pred_region
        %s516 = ssub.s32 %s30, 1
        // Predicated region
        $region13: #{tpu_custom_call.1} parent=11 // pred_check
          %p517 = pneg %p77
        $region14: #{tpu_custom_call.1} parent=11 // pred_check_branch
          %519 = sbr.rel (%p517) target = $region16
        $region15: #{tpu_custom_call.1} parent=11 // pred_region
          _
        $region16: #{tpu_custom_call.1} parent=11 // pred_fallthru
          _
        // Predicated region
        $region17: #{tpu_custom_call.1} parent=11 // pred_check
          %p520 = pneg %p98
        $region18: #{tpu_custom_call.1} parent=11 // pred_check_branch
          %522 = sbr.rel (%p520) target = $region20
        $region19: #{tpu_custom_call.1} parent=11 // pred_region
          _
        $region20: #{tpu_custom_call.1} parent=11 // pred_fallthru
          _
        // Predicated region
        $region21: #{tpu_custom_call.1} parent=11 // pred_check
          %p523 = pneg %p119
        $region22: #{tpu_custom_call.1} parent=11 // pred_check_branch
          %525 = sbr.rel (%p523) target = $region24
        $region23: #{tpu_custom_call.1} parent=11 // pred_region
          _
        $region24: #{tpu_custom_call.1} parent=11 // pred_fallthru
          _
        // Predicated region
        $region25: #{tpu_custom_call.1} parent=11 // pred_check
          %p526 = pneg %p140
        $region26: #{tpu_custom_call.1} parent=11 // pred_check_branch
          %528 = sbr.rel (%p526) target = $region28
        $region27: #{tpu_custom_call.1} parent=11 // pred_region
          _
        $region28: #{tpu_custom_call.1} parent=11 // pred_fallthru
          _
        // Predicated region
        $region29: #{tpu_custom_call.1} parent=11 // pred_check
          %p529 = pneg %p161
        $region30: #{tpu_custom_call.1} parent=11 // pred_check_branch
          %531 = sbr.rel (%p529) target = $region32
        $region31: #{tpu_custom_call.1} parent=11 // pred_region
          _
        $region32: #{tpu_custom_call.1} parent=11 // pred_fallthru
          _
        // Predicated region
        $region33: #{tpu_custom_call.1} parent=11 // pred_check
          %p532 = pneg %p182
        $region34: #{tpu_custom_call.1} parent=11 // pred_check_branch
          %534 = sbr.rel (%p532) target = $region36
        $region35: #{tpu_custom_call.1} parent=11 // pred_region
          _
        $region36: #{tpu_custom_call.1} parent=11 // pred_fallthru
          _
        // Predicated region
        $region37: #{tpu_custom_call.1} parent=11 // pred_check
          %p535 = pneg %p203
        $region38: #{tpu_custom_call.1} parent=11 // pred_check_branch
          %537 = sbr.rel (%p535) target = $region40
        $region39: #{tpu_custom_call.1} parent=11 // pred_region
          _
        $region40: #{tpu_custom_call.1} parent=11 // pred_fallthru
          _
        // Predicated region
        $region41: #{tpu_custom_call.1} parent=11 // pred_check
          %p538 = pneg %p224
        $region42: #{tpu_custom_call.1} parent=11 // pred_check_branch
          %540 = sbr.rel (%p538) target = $region44
        $region43: #{tpu_custom_call.1} parent=11 // pred_region
          _
        $region44: #{tpu_custom_call.1} parent=11 // pred_fallthru
          _
        // Predicated region
        $region45: #{tpu_custom_call.1} parent=11 // pred_check
          %p541 = pneg %p245
        $region46: #{tpu_custom_call.1} parent=11 // pred_check_branch
          %543 = sbr.rel (%p541) target = $region48
        $region47: #{tpu_custom_call.1} parent=11 // pred_region
          _
        $region48: #{tpu_custom_call.1} parent=11 // pred_fallthru
          _
        // Predicated region
        $region49: #{tpu_custom_call.1} parent=11 // pred_check
          %p544 = pneg %p266
        $region50: #{tpu_custom_call.1} parent=11 // pred_check_branch
          %546 = sbr.rel (%p544) target = $region52
        $region51: #{tpu_custom_call.1} parent=11 // pred_region
          _
        $region52: #{tpu_custom_call.1} parent=11 // pred_fallthru
          _
        // Predicated region
        $region53: #{tpu_custom_call.1} parent=11 // pred_check
          %p547 = pneg %p287
        $region54: #{tpu_custom_call.1} parent=11 // pred_check_branch
          %549 = sbr.rel (%p547) target = $region56
        $region55: #{tpu_custom_call.1} parent=11 // pred_region
          _
        $region56: #{tpu_custom_call.1} parent=11 // pred_fallthru
          _
        // Predicated region
        $region57: #{tpu_custom_call.1} parent=11 // pred_check
          %p550 = pneg %p308
        $region58: #{tpu_custom_call.1} parent=11 // pred_check_branch
          %552 = sbr.rel (%p550) target = $region60
        $region59: #{tpu_custom_call.1} parent=11 // pred_region
          _
        $region60: #{tpu_custom_call.1} parent=11 // pred_fallthru
          _
        // Predicated region
        $region61: #{tpu_custom_call.1} parent=11 // pred_check
          %p553 = pneg %p329
        $region62: #{tpu_custom_call.1} parent=11 // pred_check_branch
          %555 = sbr.rel (%p553) target = $region64
        $region63: #{tpu_custom_call.1} parent=11 // pred_region
          _
        $region64: #{tpu_custom_call.1} parent=11 // pred_fallthru
          _
        // Predicated region
        $region65: #{tpu_custom_call.1} parent=11 // pred_check
          %p556 = pneg %p350
        $region66: #{tpu_custom_call.1} parent=11 // pred_check_branch
          %558 = sbr.rel (%p556) target = $region68
        $region67: #{tpu_custom_call.1} parent=11 // pred_region
          _
        $region68: #{tpu_custom_call.1} parent=11 // pred_fallthru
          _
        // Predicated region
        $region69: #{tpu_custom_call.1} parent=11 // pred_check
          %p559 = pneg %p371
        $region70: #{tpu_custom_call.1} parent=11 // pred_check_branch
          %561 = sbr.rel (%p559) target = $region72
        $region71: #{tpu_custom_call.1} parent=11 // pred_region
          _
        $region72: #{tpu_custom_call.1} parent=11 // pred_fallthru
          _
        // Predicated region
        $region73: #{tpu_custom_call.1} parent=11 // pred_check
          %p562 = pneg %p392
        $region74: #{tpu_custom_call.1} parent=11 // pred_check_branch
          %564 = sbr.rel (%p562) target = $region76
        $region75: #{tpu_custom_call.1} parent=11 // pred_region
          _
        $region76: #{tpu_custom_call.1} parent=11 // pred_fallthru
          _
        // Predicated region
        $region77: #{tpu_custom_call.1} parent=11 // pred_check
          %p565 = pneg %p413
        $region78: #{tpu_custom_call.1} parent=11 // pred_check_branch
          %567 = sbr.rel (%p565) target = $region80
        $region79: #{tpu_custom_call.1} parent=11 // pred_region
          _
        $region80: #{tpu_custom_call.1} parent=11 // pred_fallthru
          _
        // Predicated region
        $region81: #{tpu_custom_call.1} parent=11 // pred_check
          %p568 = pneg %p434
        $region82: #{tpu_custom_call.1} parent=11 // pred_check_branch
          %570 = sbr.rel (%p568) target = $region84
        $region83: #{tpu_custom_call.1} parent=11 // pred_region
          _
        $region84: #{tpu_custom_call.1} parent=11 // pred_fallthru
          _
        // Predicated region
        $region85: #{tpu_custom_call.1} parent=11 // pred_check
          %p571 = pneg %p455
        $region86: #{tpu_custom_call.1} parent=11 // pred_check_branch
          %573 = sbr.rel (%p571) target = $region88
        $region87: #{tpu_custom_call.1} parent=11 // pred_region
          _
        $region88: #{tpu_custom_call.1} parent=11 // pred_fallthru
          _
        // Predicated region
        $region89: #{tpu_custom_call.1} parent=11 // pred_check
          %p574 = pneg %p476
        $region90: #{tpu_custom_call.1} parent=11 // pred_check_branch
          %576 = sbr.rel (%p574) target = $region92
        $region91: #{tpu_custom_call.1} parent=11 // pred_region
          _
        $region92: #{tpu_custom_call.1} parent=11 // pred_fallthru
          _
      $region12: #{tpu_custom_call.1} parent=5 // pred_fallthru
        _
      %p577 = scmp.lt.s32.totalorder %s30, 2
      // Predicated region
      $region93: #{tpu_custom_call.1} parent=5 // pred_check
        %p578 = pneg %p577
      $region94: #{tpu_custom_call.1} parent=5 // pred_check_branch
        %580 = sbr.rel (%p578) target = $region96
      $region95: #{tpu_custom_call.1} parent=5 // pred_region
        // Predicated region
        $region97: #{tpu_custom_call.1} parent=95 // pred_check
          %p581 = pneg %p50
        $region98: #{tpu_custom_call.1} parent=95 // pred_check_branch
          %583 = sbr.rel (%p581) target = $region100
        $region99: #{tpu_custom_call.1} parent=95 // pred_region
          %p584 = scmp.lt.s32.totalorder %s30, 1
          %s585 = scalar_select %p584, %s30, 1
          %s586 = smul.addr %s585, 8
          %s587 = scalar_lea.vmem %s0, %s586
        $region100: #{tpu_custom_call.1} parent=95 // pred_fallthru
          _
      $region96: #{tpu_custom_call.1} parent=5 // pred_fallthru
        _
      %p588 = scmp.le.s32.totalorder 1, %s30
      %p589 = scmp.lt.s32.totalorder %s30, 3
      %p590 = pnand %p588, %p589
      %p591 = pneg %p590
      // Predicated region
      $region101: #{tpu_custom_call.1} parent=5 // pred_check
        _
      $region102: #{tpu_custom_call.1} parent=5 // pred_check_branch
        %593 = sbr.rel (%p590) target = $region104
      $region103: #{tpu_custom_call.1} parent=5 // pred_region
        %s594 = ssub.s32 %s30, 1
        %p595 = scmp.lt.s32.totalorder %s35, 1
        %s596 = scalar_select %p595, %s35, 1
        %s597 = smul.addr %s596, 8
        %s598 = scalar_lea.vmem %s0, %s597
        %p599 = pneg %p56
        %p600 = pneg %p53
        %p601 = pneg %p77
        %p602 = pneg %p74
        %p603 = pneg %p98
        %p604 = pneg %p95
        %p605 = pneg %p119
        %p606 = pneg %p116
        %p607 = pneg %p140
        %p608 = pneg %p137
        %p609 = pneg %p161
        %p610 = pneg %p158
        %p611 = pneg %p182
        %p612 = pneg %p179
        %p613 = pneg %p203
        %p614 = pneg %p200
        %p615 = pneg %p224
        %p616 = pneg %p221
        %p617 = pneg %p245
        %p618 = pneg %p242
        %p619 = pneg %p266
        %p620 = pneg %p263
        %p621 = pneg %p287
        %p622 = pneg %p284
        %p623 = pneg %p308
        %p624 = pneg %p305
        %p625 = pneg %p329
        %p626 = pneg %p326
        %p627 = pneg %p350
        %p628 = pneg %p347
        %p629 = pneg %p371
        %p630 = pneg %p368
        %p631 = pneg %p392
        %p632 = pneg %p389
        %p633 = pneg %p413
        %p634 = pneg %p410
        %p635 = pneg %p434
        %p636 = pneg %p431
        %p637 = pneg %p455
        %p638 = pneg %p452
        %p639 = pneg %p476
        %p640 = pneg %p473
        %p641 = pneg %p502
        %p642 = pneg %p499
        %s643 = sand.u32 %s489, 1
        %s644 = scalar_lea.sflag [#allocation3], %s643
        %s645 = sand.u32 %s489, 1
        %s646 = smul.addr %s645, 8
        %s647 = scalar_lea.vmem [#allocation2], %s646
        %p648 = scmp.lt.s32.totalorder %s35, 1
        %s649 = scalar_select %p648, %s35, 1
        %s650 = smul.addr %s649, 8
        %s651 = scalar_lea.vmem %s0, %s650
        %v653 = vld [vmem:[%s651] sm:$0xff]
        %v654 = vld [vmem:[%s1] sm:$0x1]
        %v655 = vld [vmem:[%s2] sm:$0x1]
        %vm656 = vcmask 261120
        %v657 = vsel %vm656, %v653, 0.0
        %658 = vadd.xlane.f32.xlu0 %v657
        %v659 = vpop.xlane.xlu0 %658
        %v660 = vrcp.pop 32.0
        %v661 = vmul.f32 32.0, %v660
        %v662 = vsub.f32 1.0, %v661
        %v663 = vmul.f32 %v660, %v662
        %v664 = vadd.f32 %v660, %v663
        %vm665 = vweird.f32 %v660
        %v666 = vsel %vm665, %v660, %v664
        %v667 = vmul.f32 %v659, %v666
        %v668 = vsub.f32 %v653, %v667
        %v669 = vmul.f32 %v668, %v668
        %v670 = vsel %vm656, %v669, 0.0
        %671 = vadd.xlane.f32.xlu0 %v670
        %v672 = vpop.xlane.xlu0 %671
        %v673 = vmul.f32 %v672, %v666
        %v674 = vadd.f32 %v673, 1e-05
        %v675 = vrsqrt.pop %v674
        %v676 = vmul.f32 %v675, %v674
        %v677 = vmul.f32 %v676, %v675
        %v678 = vmul.f32 0.5, %v677
        %v679 = vsub.f32 1.5, %v678
        %v680 = vmul.f32 %v675, %v679
        %vm681 = vweird.f32 %v674
        %vm682 = vweird.f32 %v675
        %vm683 = vmor %vm681, %vm682
        %v684 = vsel %vm683, %v675, %v680
        %v685 = vmul.f32 %v668, %v684
        %v687 = vperm.slane %v654, 0
        %v689 = vmul.f32 %v685, %v687
        %v691 = vperm.slane %v655, 0
        %v693 = vadd.f32 %v689, %v691
        %v694 = vpack.c.bf16 %v693, %v693
        %v695 = vld [vmem:[%s3] sm:$0xf]
        %v696 = vld [vmem:[%s3 + $0x4] sm:$0xf]
        %v697 = vld [vmem:[%s3 + $0x8] sm:$0xf]
        %v698 = vld [vmem:[%s3 + $0xc] sm:$0xf]
        %v699 = vld [vmem:[%s3 + $0x10] sm:$0xf]
        %v700 = vld [vmem:[%s3 + $0x14] sm:$0xf]
        %v701 = vld [vmem:[%s3 + $0x18] sm:$0xf]
        %v702 = vld [vmem:[%s3 + $0x1c] sm:$0xf]
        %v703 = vld [vmem:[%s3 + $0x20] sm:$0xf]
        %v704 = vld [vmem:[%s3 + $0x24] sm:$0xf]
        %v705 = vld [vmem:[%s3 + $0x28] sm:$0xf]
        %v706 = vld [vmem:[%s3 + $0x2c] sm:$0xf]
        %v707 = vld [vmem:[%s3 + $0x30] sm:$0xf]
        %v708 = vld [vmem:[%s3 + $0x34] sm:$0xf]
        %v709 = vld [vmem:[%s3 + $0x38] sm:$0xf]
        %v710 = vld [vmem:[%s3 + $0x3c] sm:$0xf]
        %v711 = vld [vmem:[%s4] sm:$0x1]
        %v712 = vld [vmem:[%s4 + $0x1] sm:$0x1]
        %v713 = vld [vmem:[%s4 + $0x2] sm:$0x1]
        %v714 = vld [vmem:[%s4 + $0x3] sm:$0x1]
        %v719 = vperm.slane %v711, 0
        %v720 = vperm.slane %v712, 0
        %v721 = vperm.slane %v713, 0
        %v722 = vperm.slane %v714, 0
        %v731 = vunpack.c.l.b16 %v695
        %v732 = vunpack.c.l.b16 %v696
        %v733 = vunpack.c.l.b16 %v697
        %v734 = vunpack.c.l.b16 %v698
        %v735 = vpack.c.b16 %v732, %v731
        %v736 = vpack.c.b16 %v734, %v733
        %v740 = vsel %vm656, %v694, 0
        %742 = vmatpush.bf16.msra.mxu0 0
        %743 = vmatpush.bf16.msra.mxu0 0
        %744 = vmatpush.bf16.msra.mxu0 0
        %745 = vmatpush.bf16.msra.mxu0 0
        %746 = vmatpush.bf16.msra.mxu0 0
        %747 = vmatpush.bf16.msra.mxu0 0
        %748 = vmatpush.bf16.msra.mxu0 %v736
        %749 = vmatpush.bf16.msra.mxu0 %v735
        %750 = vmatmul.bf16.gmra.mxu0 %v740
        %v751 = vpop.f32.mrf.mxu0
        %v752 = vadd.f32 %v719, %v751
        %v753 = vpop.f32.mrf.mxu0
        %754 = vdwg.mxu0
        %v759 = vunpack.c.l.b16 %v699
        %v760 = vunpack.c.l.b16 %v700
        %v761 = vunpack.c.l.b16 %v701
        %v762 = vunpack.c.l.b16 %v702
        %v763 = vpack.c.b16 %v760, %v759
        %v764 = vpack.c.b16 %v762, %v761
        %767 = vmatpush.bf16.msra.mxu0 0
        %768 = vmatpush.bf16.msra.mxu0 0
        %769 = vmatpush.bf16.msra.mxu0 0
        %770 = vmatpush.bf16.msra.mxu0 0
        %771 = vmatpush.bf16.msra.mxu0 0
        %772 = vmatpush.bf16.msra.mxu0 0
        %773 = vmatpush.bf16.msra.mxu0 %v764
        %774 = vmatpush.bf16.msra.mxu0 %v763
        %775 = vmatmul.bf16.gmra.mxu0 %v740
        %v776 = vpop.f32.mrf.mxu0
        %v777 = vadd.f32 %v720, %v776
        %v778 = vpop.f32.mrf.mxu0
        %779 = vdwg.mxu0
        %v784 = vunpack.c.l.b16 %v703
        %v785 = vunpack.c.l.b16 %v704
        %v786 = vunpack.c.l.b16 %v705
        %v787 = vunpack.c.l.b16 %v706
        %v788 = vpack.c.b16 %v785, %v784
        %v789 = vpack.c.b16 %v787, %v786
        %792 = vmatpush.bf16.msra.mxu0 0
        %793 = vmatpush.bf16.msra.mxu0 0
        %794 = vmatpush.bf16.msra.mxu0 0
        %795 = vmatpush.bf16.msra.mxu0 0
        %796 = vmatpush.bf16.msra.mxu0 0
        %797 = vmatpush.bf16.msra.mxu0 0
        %798 = vmatpush.bf16.msra.mxu0 %v789
        %799 = vmatpush.bf16.msra.mxu0 %v788
        %800 = vmatmul.bf16.gmra.mxu0 %v740
        %v801 = vpop.f32.mrf.mxu0
        %v802 = vadd.f32 %v721, %v801
        %v803 = vpop.f32.mrf.mxu0
        %804 = vdwg.mxu0
        %v809 = vunpack.c.l.b16 %v707
        %v810 = vunpack.c.l.b16 %v708
        %v811 = vunpack.c.l.b16 %v709
        %v812 = vunpack.c.l.b16 %v710
        %v813 = vpack.c.b16 %v810, %v809
        %v814 = vpack.c.b16 %v812, %v811
        %817 = vmatpush.bf16.msra.mxu0 0
        %818 = vmatpush.bf16.msra.mxu0 0
        %819 = vmatpush.bf16.msra.mxu0 0
        %820 = vmatpush.bf16.msra.mxu0 0
        %821 = vmatpush.bf16.msra.mxu0 0
        %822 = vmatpush.bf16.msra.mxu0 0
        %823 = vmatpush.bf16.msra.mxu0 %v814
        %824 = vmatpush.bf16.msra.mxu0 %v813
        %825 = vmatmul.bf16.gmra.mxu0 %v740
        %v826 = vpop.f32.mrf.mxu0
        %v827 = vadd.f32 %v722, %v826
        %v828 = vpop.f32.mrf.mxu0
        %829 = vdwg.mxu0
        %v830 = vld [vmem:[%s5] sm:$0xf]
        %v831 = vld [vmem:[%s5 + $0x4] sm:$0xf]
        %v832 = vld [vmem:[%s5 + $0x8] sm:$0xf]
        %v833 = vld [vmem:[%s5 + $0xc] sm:$0xf]
        %v834 = vld [vmem:[%s5 + $0x10] sm:$0xf]
        %v835 = vld [vmem:[%s5 + $0x14] sm:$0xf]
        %v836 = vld [vmem:[%s5 + $0x18] sm:$0xf]
        %v837 = vld [vmem:[%s5 + $0x1c] sm:$0xf]
        %v838 = vld [vmem:[%s5 + $0x20] sm:$0xf]
        %v839 = vld [vmem:[%s5 + $0x24] sm:$0xf]
        %v840 = vld [vmem:[%s5 + $0x28] sm:$0xf]
        %v841 = vld [vmem:[%s5 + $0x2c] sm:$0xf]
        %v842 = vld [vmem:[%s5 + $0x30] sm:$0xf]
        %v843 = vld [vmem:[%s5 + $0x34] sm:$0xf]
        %v844 = vld [vmem:[%s5 + $0x38] sm:$0xf]
        %v845 = vld [vmem:[%s5 + $0x3c] sm:$0xf]
        %v846 = vld [vmem:[%s6] sm:$0x1]
        %v847 = vld [vmem:[%s6 + $0x1] sm:$0x1]
        %v848 = vld [vmem:[%s6 + $0x2] sm:$0x1]
        %v849 = vld [vmem:[%s6 + $0x3] sm:$0x1]
        %v854 = vperm.slane %v846, 0
        %v855 = vperm.slane %v847, 0
        %v856 = vperm.slane %v848, 0
        %v857 = vperm.slane %v849, 0
        %v866 = vunpack.c.l.b16 %v830
        %v867 = vunpack.c.l.b16 %v831
        %v868 = vunpack.c.l.b16 %v832
        %v869 = vunpack.c.l.b16 %v833
        %v870 = vpack.c.b16 %v867, %v866
        %v871 = vpack.c.b16 %v869, %v868
        %874 = vmatpush.bf16.msra.mxu0 0
        %875 = vmatpush.bf16.msra.mxu0 0
        %876 = vmatpush.bf16.msra.mxu0 0
        %877 = vmatpush.bf16.msra.mxu0 0
        %878 = vmatpush.bf16.msra.mxu0 0
        %879 = vmatpush.bf16.msra.mxu0 0
        %880 = vmatpush.bf16.msra.mxu0 %v871
        %881 = vmatpush.bf16.msra.mxu0 %v870
        %882 = vmatmul.bf16.gmra.mxu0 %v740
        %v883 = vpop.f32.mrf.mxu0
        %v884 = vadd.f32 %v854, %v883
        %v885 = vpop.f32.mrf.mxu0
        %886 = vdwg.mxu0
        %v891 = vunpack.c.l.b16 %v834
        %v892 = vunpack.c.l.b16 %v835
        %v893 = vunpack.c.l.b16 %v836
        %v894 = vunpack.c.l.b16 %v837
        %v895 = vpack.c.b16 %v892, %v891
        %v896 = vpack.c.b16 %v894, %v893
        %899 = vmatpush.bf16.msra.mxu0 0
        %900 = vmatpush.bf16.msra.mxu0 0
        %901 = vmatpush.bf16.msra.mxu0 0
        %902 = vmatpush.bf16.msra.mxu0 0
        %903 = vmatpush.bf16.msra.mxu0 0
        %904 = vmatpush.bf16.msra.mxu0 0
        %905 = vmatpush.bf16.msra.mxu0 %v896
        %906 = vmatpush.bf16.msra.mxu0 %v895
        %907 = vmatmul.bf16.gmra.mxu0 %v740
        %v908 = vpop.f32.mrf.mxu0
        %v909 = vadd.f32 %v855, %v908
        %v910 = vpop.f32.mrf.mxu0
        %911 = vdwg.mxu0
        %v916 = vunpack.c.l.b16 %v838
        %v917 = vunpack.c.l.b16 %v839
        %v918 = vunpack.c.l.b16 %v840
        %v919 = vunpack.c.l.b16 %v841
        %v920 = vpack.c.b16 %v917, %v916
        %v921 = vpack.c.b16 %v919, %v918
        %924 = vmatpush.bf16.msra.mxu0 0
        %925 = vmatpush.bf16.msra.mxu0 0
        %926 = vmatpush.bf16.msra.mxu0 0
        %927 = vmatpush.bf16.msra.mxu0 0
        %928 = vmatpush.bf16.msra.mxu0 0
        %929 = vmatpush.bf16.msra.mxu0 0
        %930 = vmatpush.bf16.msra.mxu0 %v921
        %931 = vmatpush.bf16.msra.mxu0 %v920
        %932 = vmatmul.bf16.gmra.mxu0 %v740
        %v933 = vpop.f32.mrf.mxu0
        %v934 = vadd.f32 %v856, %v933
        %v935 = vpop.f32.mrf.mxu0
        %936 = vdwg.mxu0
        %v941 = vunpack.c.l.b16 %v842
        %v942 = vunpack.c.l.b16 %v843
        %v943 = vunpack.c.l.b16 %v844
        %v944 = vunpack.c.l.b16 %v845
        %v945 = vpack.c.b16 %v942, %v941
        %v946 = vpack.c.b16 %v944, %v943
        %949 = vmatpush.bf16.msra.mxu0 0
        %950 = vmatpush.bf16.msra.mxu0 0
        %951 = vmatpush.bf16.msra.mxu0 0
        %952 = vmatpush.bf16.msra.mxu0 0
        %953 = vmatpush.bf16.msra.mxu0 0
        %954 = vmatpush.bf16.msra.mxu0 0
        %955 = vmatpush.bf16.msra.mxu0 %v946
        %956 = vmatpush.bf16.msra.mxu0 %v945
        %957 = vmatmul.bf16.gmra.mxu0 %v740
        %v958 = vpop.f32.mrf.mxu0
        %v959 = vadd.f32 %v857, %v958
        %v960 = vpop.f32.mrf.mxu0
        %961 = vdwg.mxu0
        %v962 = vld [vmem:[%s7] sm:$0xf]
        %v963 = vld [vmem:[%s7 + $0x4] sm:$0xf]
        %v964 = vld [vmem:[%s7 + $0x8] sm:$0xf]
        %v965 = vld [vmem:[%s7 + $0xc] sm:$0xf]
        %v966 = vld [vmem:[%s7 + $0x10] sm:$0xf]
        %v967 = vld [vmem:[%s7 + $0x14] sm:$0xf]
        %v968 = vld [vmem:[%s7 + $0x18] sm:$0xf]
        %v969 = vld [vmem:[%s7 + $0x1c] sm:$0xf]
        %v970 = vld [vmem:[%s7 + $0x20] sm:$0xf]
        %v971 = vld [vmem:[%s7 + $0x24] sm:$0xf]
        %v972 = vld [vmem:[%s7 + $0x28] sm:$0xf]
        %v973 = vld [vmem:[%s7 + $0x2c] sm:$0xf]
        %v974 = vld [vmem:[%s7 + $0x30] sm:$0xf]
        %v975 = vld [vmem:[%s7 + $0x34] sm:$0xf]
        %v976 = vld [vmem:[%s7 + $0x38] sm:$0xf]
        %v977 = vld [vmem:[%s7 + $0x3c] sm:$0xf]
        %v978 = vld [vmem:[%s8] sm:$0x1]
        %v979 = vld [vmem:[%s8 + $0x1] sm:$0x1]
        %v980 = vld [vmem:[%s8 + $0x2] sm:$0x1]
        %v981 = vld [vmem:[%s8 + $0x3] sm:$0x1]
        %v986 = vperm.slane %v978, 0
        %v987 = vperm.slane %v979, 0
        %v988 = vperm.slane %v980, 0
        %v989 = vperm.slane %v981, 0
        %v998 = vunpack.c.l.b16 %v962
        %v999 = vunpack.c.l.b16 %v963
        %v1000 = vunpack.c.l.b16 %v964
        %v1001 = vunpack.c.l.b16 %v965
        %v1002 = vpack.c.b16 %v999, %v998
        %v1003 = vpack.c.b16 %v1001, %v1000
        %1006 = vmatpush.bf16.msra.mxu0 0
        %1007 = vmatpush.bf16.msra.mxu0 0
        %1008 = vmatpush.bf16.msra.mxu0 0
        %1009 = vmatpush.bf16.msra.mxu0 0
        %1010 = vmatpush.bf16.msra.mxu0 0
        %1011 = vmatpush.bf16.msra.mxu0 0
        %1012 = vmatpush.bf16.msra.mxu0 %v1003
        %1013 = vmatpush.bf16.msra.mxu0 %v1002
        %1014 = vmatmul.bf16.gmra.mxu0 %v740
        %v1015 = vpop.f32.mrf.mxu0
        %v1016 = vadd.f32 %v986, %v1015
        %v1017 = vpop.f32.mrf.mxu0
        %1018 = vdwg.mxu0
        %v1023 = vunpack.c.l.b16 %v966
        %v1024 = vunpack.c.l.b16 %v967
        %v1025 = vunpack.c.l.b16 %v968
        %v1026 = vunpack.c.l.b16 %v969
        %v1027 = vpack.c.b16 %v1024, %v1023
        %v1028 = vpack.c.b16 %v1026, %v1025
        %1031 = vmatpush.bf16.msra.mxu0 0
        %1032 = vmatpush.bf16.msra.mxu0 0
        %1033 = vmatpush.bf16.msra.mxu0 0
        %1034 = vmatpush.bf16.msra.mxu0 0
        %1035 = vmatpush.bf16.msra.mxu0 0
        %1036 = vmatpush.bf16.msra.mxu0 0
        %1037 = vmatpush.bf16.msra.mxu0 %v1028
        %1038 = vmatpush.bf16.msra.mxu0 %v1027
        %1039 = vmatmul.bf16.gmra.mxu0 %v740
        %v1040 = vpop.f32.mrf.mxu0
        %v1041 = vadd.f32 %v987, %v1040
        %v1042 = vpop.f32.mrf.mxu0
        %1043 = vdwg.mxu0
        %v1048 = vunpack.c.l.b16 %v970
        %v1049 = vunpack.c.l.b16 %v971
        %v1050 = vunpack.c.l.b16 %v972
        %v1051 = vunpack.c.l.b16 %v973
        %v1052 = vpack.c.b16 %v1049, %v1048
        %v1053 = vpack.c.b16 %v1051, %v1050
        %1056 = vmatpush.bf16.msra.mxu0 0
        %1057 = vmatpush.bf16.msra.mxu0 0
        %1058 = vmatpush.bf16.msra.mxu0 0
        %1059 = vmatpush.bf16.msra.mxu0 0
        %1060 = vmatpush.bf16.msra.mxu0 0
        %1061 = vmatpush.bf16.msra.mxu0 0
        %1062 = vmatpush.bf16.msra.mxu0 %v1053
        %1063 = vmatpush.bf16.msra.mxu0 %v1052
        %1064 = vmatmul.bf16.gmra.mxu0 %v740
        %v1065 = vpop.f32.mrf.mxu0
        %v1066 = vadd.f32 %v988, %v1065
        %v1067 = vpop.f32.mrf.mxu0
        %1068 = vdwg.mxu0
        %v1073 = vunpack.c.l.b16 %v974
        %v1074 = vunpack.c.l.b16 %v975
        %v1075 = vunpack.c.l.b16 %v976
        %v1076 = vunpack.c.l.b16 %v977
        %v1077 = vpack.c.b16 %v1074, %v1073
        %v1078 = vpack.c.b16 %v1076, %v1075
        %1081 = vmatpush.bf16.msra.mxu0 0
        %1082 = vmatpush.bf16.msra.mxu0 0
        %1083 = vmatpush.bf16.msra.mxu0 0
        %1084 = vmatpush.bf16.msra.mxu0 0
        %1085 = vmatpush.bf16.msra.mxu0 0
        %1086 = vmatpush.bf16.msra.mxu0 0
        %1087 = vmatpush.bf16.msra.mxu0 %v1078
        %1088 = vmatpush.bf16.msra.mxu0 %v1077
        %1089 = vmatmul.bf16.gmra.mxu0 %v740
        %v1090 = vpop.f32.mrf.mxu0
        %v1091 = vadd.f32 %v989, %v1090
        %v1092 = vpop.f32.mrf.mxu0
        %1093 = vdwg.mxu0
        %v1094 = vpack.c.bf16 %v752, %v752
        %v1095 = vpack.c.bf16 %v777, %v777
        %v1096 = vpack.c.bf16 %v802, %v802
        %v1097 = vpack.c.bf16 %v827, %v827
        %v1098 = vpack.c.bf16 %v884, %v884
        %v1099 = vpack.c.bf16 %v909, %v909
        %v1100 = vpack.c.bf16 %v934, %v934
        %v1101 = vpack.c.bf16 %v959, %v959
        %vm1102 = vcmask 64512
        %v1104 = vsel %vm1102, %v1094, 0
        %v1107 = vsel %vm1102, %v1098, 0
        %1109 = vmatpush.bf16.xpose.msra.mxu0 0
        %1110 = vmatpush.bf16.xpose.msra.mxu0 0
        %1111 = vmatpush.bf16.xpose.msra.mxu0 0
        %1112 = vmatpush.bf16.xpose.msra.mxu0 0
        %1113 = vmatpush.bf16.xpose.msra.mxu0 0
        %1114 = vmatpush.bf16.xpose.msra.mxu0 0
        %1115 = vmatpush.bf16.xpose.msra.mxu0 0
        %1116 = vmatpush.bf16.xpose.msra.mxu0 %v1107
        %1117 = vmatmul.bf16.gmra.mxu0 %v1104
        %v1118 = vpop.f32.mrf.mxu0
        %v1119 = vadd.f32 0.0, %v1118
        %v1120 = vpop.f32.mrf.mxu0
        %1121 = vdwg.mxu0
        %v1123 = vsel %vm1102, %v1095, 0
        %v1126 = vsel %vm1102, %v1099, 0
        %1128 = vmatpush.bf16.xpose.msra.mxu0 0
        %1129 = vmatpush.bf16.xpose.msra.mxu0 0
        %1130 = vmatpush.bf16.xpose.msra.mxu0 0
        %1131 = vmatpush.bf16.xpose.msra.mxu0 0
        %1132 = vmatpush.bf16.xpose.msra.mxu0 0
        %1133 = vmatpush.bf16.xpose.msra.mxu0 0
        %1134 = vmatpush.bf16.xpose.msra.mxu0 0
        %1135 = vmatpush.bf16.xpose.msra.mxu0 %v1126
        %1136 = vmatmul.bf16.gmra.mxu0 %v1123
        %v1137 = vpop.f32.mrf.mxu0
        %v1138 = vadd.f32 0.0, %v1137
        %v1139 = vpop.f32.mrf.mxu0
        %1140 = vdwg.mxu0
        %v1142 = vsel %vm1102, %v1096, 0
        %v1145 = vsel %vm1102, %v1100, 0
        %1147 = vmatpush.bf16.xpose.msra.mxu0 0
        %1148 = vmatpush.bf16.xpose.msra.mxu0 0
        %1149 = vmatpush.bf16.xpose.msra.mxu0 0
        %1150 = vmatpush.bf16.xpose.msra.mxu0 0
        %1151 = vmatpush.bf16.xpose.msra.mxu0 0
        %1152 = vmatpush.bf16.xpose.msra.mxu0 0
        %1153 = vmatpush.bf16.xpose.msra.mxu0 0
        %1154 = vmatpush.bf16.xpose.msra.mxu0 %v1145
        %1155 = vmatmul.bf16.gmra.mxu0 %v1142
        %v1156 = vpop.f32.mrf.mxu0
        %v1157 = vadd.f32 0.0, %v1156
        %v1158 = vpop.f32.mrf.mxu0
        %1159 = vdwg.mxu0
        %v1161 = vsel %vm1102, %v1097, 0
        %v1164 = vsel %vm1102, %v1101, 0
        %1166 = vmatpush.bf16.xpose.msra.mxu0 0
        %1167 = vmatpush.bf16.xpose.msra.mxu0 0
        %1168 = vmatpush.bf16.xpose.msra.mxu0 0
        %1169 = vmatpush.bf16.xpose.msra.mxu0 0
        %1170 = vmatpush.bf16.xpose.msra.mxu0 0
        %1171 = vmatpush.bf16.xpose.msra.mxu0 0
        %1172 = vmatpush.bf16.xpose.msra.mxu0 0
        %1173 = vmatpush.bf16.xpose.msra.mxu0 %v1164
        %1174 = vmatmul.bf16.gmra.mxu0 %v1161
        %v1175 = vpop.f32.mrf.mxu0
        %v1176 = vadd.f32 0.0, %v1175
        %v1177 = vpop.f32.mrf.mxu0
        %1178 = vdwg.mxu0
        %v1179 = vlaneseq
        %v1180 = vshrl.u32 %v1179, 7
        %v1181 = vlaneseq
        %v1182 = vand.u32 %v1181, 127
        %vm1183 = vcmp.ge.s32.totalorder %v1180, %v1182
        %v1184 = vsel %vm1183, 1, 0
        %vm1185 = vcmp.eq.s32.totalorder %v1184, 1
        %v1186 = vsel %vm1185, %v1119, -1e+30
        %v1187 = vsel %vm1185, %v1138, -1e+30
        %v1188 = vsel %vm1185, %v1157, -1e+30
        %v1189 = vsel %vm1185, %v1176, -1e+30
        %v1190 = vsel %vm1102, %v1186, -inf
        %1191 = vmax.xlane.f32.xlu0 %v1190
        %v1192 = vpop.xlane.xlu0 %1191
        %v1193 = vsel %vm1102, %v1187, -inf
        %1194 = vmax.xlane.f32.xlu0 %v1193
        %v1195 = vpop.xlane.xlu0 %1194
        %v1196 = vsel %vm1102, %v1188, -inf
        %1197 = vmax.xlane.f32.xlu0 %v1196
        %v1198 = vpop.xlane.xlu0 %1197
        %v1199 = vsel %vm1102, %v1189, -inf
        %1200 = vmax.xlane.f32.xlu0 %v1199
        %v1201 = vpop.xlane.xlu0 %1200
        %v1202 = vsub.f32 %v1186, %v1192
        %v1203 = vsub.f32 %v1187, %v1195
        %v1204 = vsub.f32 %v1188, %v1198
        %v1205 = vsub.f32 %v1189, %v1201
        %v1206 = vmul.f32 %v1202, 1.442695
        %v1207 = vpow.pop %v1206
        %v1208 = vmul.f32 %v1203, 1.442695
        %v1209 = vpow.pop %v1208
        %v1210 = vmul.f32 %v1204, 1.442695
        %v1211 = vpow.pop %v1210
        %v1212 = vmul.f32 %v1205, 1.442695
        %v1213 = vpow.pop %v1212
        %v1214 = vsel %vm1102, %v1207, 0.0
        %1215 = vadd.xlane.f32.xlu0 %v1214
        %v1216 = vpop.xlane.xlu0 %1215
        %v1217 = vsel %vm1102, %v1209, 0.0
        %1218 = vadd.xlane.f32.xlu0 %v1217
        %v1219 = vpop.xlane.xlu0 %1218
        %v1220 = vsel %vm1102, %v1211, 0.0
        %1221 = vadd.xlane.f32.xlu0 %v1220
        %v1222 = vpop.xlane.xlu0 %1221
        %v1223 = vsel %vm1102, %v1213, 0.0
        %1224 = vadd.xlane.f32.xlu0 %v1223
        %v1225 = vpop.xlane.xlu0 %1224
        %v1226 = vrcp.pop %v1216
        %v1227 = vrcp.pop %v1219
        %v1228 = vrcp.pop %v1222
        %v1229 = vrcp.pop %v1225
        %v1230 = vmul.f32 %v1207, %v1226
        %v1231 = vmul.f32 %v1209, %v1227
        %v1232 = vmul.f32 %v1211, %v1228
        %v1233 = vmul.f32 %v1213, %v1229
        %v1234 = vpack.c.bf16 %v1230, %v1230
        %v1235 = vpack.c.bf16 %v1231, %v1231
        %v1236 = vpack.c.bf16 %v1232, %v1232
        %v1237 = vpack.c.bf16 %v1233, %v1233
        %v1238 = vpack.c.bf16 %v1016, %v1016
        %v1239 = vpack.c.bf16 %v1041, %v1041
        %v1240 = vpack.c.bf16 %v1066, %v1066
        %v1241 = vpack.c.bf16 %v1091, %v1091
        %v1243 = vsel %vm1102, %v1234, 0
        %vm1245 = vcmask 1043456
        %v1247 = vsel %vm1245, %v1238, 0
        %1249 = vmatpush.bf16.msra.mxu0 0
        %1250 = vmatpush.bf16.msra.mxu0 0
        %1251 = vmatpush.bf16.msra.mxu0 0
        %1252 = vmatpush.bf16.msra.mxu0 0
        %1253 = vmatpush.bf16.msra.mxu0 0
        %1254 = vmatpush.bf16.msra.mxu0 0
        %1255 = vmatpush.bf16.msra.mxu0 0
        %1256 = vmatpush.bf16.msra.mxu0 %v1247
        %1257 = vmatmul.bf16.gmra.mxu0 %v1243
        %v1258 = vpop.f32.mrf.mxu0
        %v1259 = vadd.f32 0.0, %v1258
        %v1260 = vpop.f32.mrf.mxu0
        %1261 = vdwg.mxu0
        %v1263 = vsel %vm1102, %v1235, 0
        %v1266 = vsel %vm1245, %v1239, 0
        %1268 = vmatpush.bf16.msra.mxu0 0
        %1269 = vmatpush.bf16.msra.mxu0 0
        %1270 = vmatpush.bf16.msra.mxu0 0
        %1271 = vmatpush.bf16.msra.mxu0 0
        %1272 = vmatpush.bf16.msra.mxu0 0
        %1273 = vmatpush.bf16.msra.mxu0 0
        %1274 = vmatpush.bf16.msra.mxu0 0
        %1275 = vmatpush.bf16.msra.mxu0 %v1266
        %1276 = vmatmul.bf16.gmra.mxu0 %v1263
        %v1277 = vpop.f32.mrf.mxu0
        %v1278 = vadd.f32 0.0, %v1277
        %v1279 = vpop.f32.mrf.mxu0
        %1280 = vdwg.mxu0
        %v1282 = vsel %vm1102, %v1236, 0
        %v1285 = vsel %vm1245, %v1240, 0
        %1287 = vmatpush.bf16.msra.mxu0 0
        %1288 = vmatpush.bf16.msra.mxu0 0
        %1289 = vmatpush.bf16.msra.mxu0 0
        %1290 = vmatpush.bf16.msra.mxu0 0
        %1291 = vmatpush.bf16.msra.mxu0 0
        %1292 = vmatpush.bf16.msra.mxu0 0
        %1293 = vmatpush.bf16.msra.mxu0 0
        %1294 = vmatpush.bf16.msra.mxu0 %v1285
        %1295 = vmatmul.bf16.gmra.mxu0 %v1282
        %v1296 = vpop.f32.mrf.mxu0
        %v1297 = vadd.f32 0.0, %v1296
        %v1298 = vpop.f32.mrf.mxu0
        %1299 = vdwg.mxu0
        %v1301 = vsel %vm1102, %v1237, 0
        %v1304 = vsel %vm1245, %v1241, 0
        %1306 = vmatpush.bf16.msra.mxu0 0
        %1307 = vmatpush.bf16.msra.mxu0 0
        %1308 = vmatpush.bf16.msra.mxu0 0
        %1309 = vmatpush.bf16.msra.mxu0 0
        %1310 = vmatpush.bf16.msra.mxu0 0
        %1311 = vmatpush.bf16.msra.mxu0 0
        %1312 = vmatpush.bf16.msra.mxu0 0
        %1313 = vmatpush.bf16.msra.mxu0 %v1304
        %1314 = vmatmul.bf16.gmra.mxu0 %v1301
        %v1315 = vpop.f32.mrf.mxu0
        %v1316 = vadd.f32 0.0, %v1315
        %v1317 = vpop.f32.mrf.mxu0
        %1318 = vdwg.mxu0
        %v1319 = vpack.c.bf16 %v1259, %v1259
        %v1320 = vpack.c.bf16 %v1278, %v1278
        %v1321 = vpack.c.bf16 %v1297, %v1297
        %v1322 = vpack.c.bf16 %v1316, %v1316
        %v1323 = vld [vmem:[%s9] sm:$0xf]
        %v1324 = vld [vmem:[%s9 + $0x4] sm:$0xf]
        %v1325 = vld [vmem:[%s9 + $0x8] sm:$0xf]
        %v1326 = vld [vmem:[%s9 + $0xc] sm:$0xf]
        %v1328 = vsel %vm1102, %v1319, 0
        %v1331 = vsel %vm1245, %v1323, 0
        %1333 = vmatpush.bf16.msra.mxu0 0
        %1334 = vmatpush.bf16.msra.mxu0 0
        %1335 = vmatpush.bf16.msra.mxu0 0
        %1336 = vmatpush.bf16.msra.mxu0 0
        %1337 = vmatpush.bf16.msra.mxu0 0
        %1338 = vmatpush.bf16.msra.mxu0 0
        %1339 = vmatpush.bf16.msra.mxu0 0
        %1340 = vmatpush.bf16.msra.mxu0 %v1331
        %1341 = vmatmul.bf16.gmra.mxu0 %v1328
        %v1342 = vpop.f32.mrf.mxu0
        %v1343 = vadd.f32 0.0, %v1342
        %v1344 = vpop.f32.mrf.mxu0
        %1345 = vdwg.mxu0
        %v1347 = vsel %vm1102, %v1320, 0
        %v1350 = vsel %vm1245, %v1324, 0
        %1352 = vmatpush.bf16.msra.mxu0 0
        %1353 = vmatpush.bf16.msra.mxu0 0
        %1354 = vmatpush.bf16.msra.mxu0 0
        %1355 = vmatpush.bf16.msra.mxu0 0
        %1356 = vmatpush.bf16.msra.mxu0 0
        %1357 = vmatpush.bf16.msra.mxu0 0
        %1358 = vmatpush.bf16.msra.mxu0 0
        %1359 = vmatpush.bf16.msra.mxu0 %v1350
        %1360 = vmatmul.bf16.gmra.mxu0 %v1347
        %v1361 = vpop.f32.mrf.mxu0
        %v1362 = vadd.f32 0.0, %v1361
        %v1363 = vpop.f32.mrf.mxu0
        %1364 = vdwg.mxu0
        %v1366 = vsel %vm1102, %v1321, 0
        %v1369 = vsel %vm1245, %v1325, 0
        %1371 = vmatpush.bf16.msra.mxu0 0
        %1372 = vmatpush.bf16.msra.mxu0 0
        %1373 = vmatpush.bf16.msra.mxu0 0
        %1374 = vmatpush.bf16.msra.mxu0 0
        %1375 = vmatpush.bf16.msra.mxu0 0
        %1376 = vmatpush.bf16.msra.mxu0 0
        %1377 = vmatpush.bf16.msra.mxu0 0
        %1378 = vmatpush.bf16.msra.mxu0 %v1369
        %1379 = vmatmul.bf16.gmra.mxu0 %v1366
        %v1380 = vpop.f32.mrf.mxu0
        %v1381 = vadd.f32 0.0, %v1380
        %v1382 = vpop.f32.mrf.mxu0
        %1383 = vdwg.mxu0
        %v1385 = vsel %vm1102, %v1322, 0
        %v1388 = vsel %vm1245, %v1326, 0
        %1390 = vmatpush.bf16.msra.mxu0 0
        %1391 = vmatpush.bf16.msra.mxu0 0
        %1392 = vmatpush.bf16.msra.mxu0 0
        %1393 = vmatpush.bf16.msra.mxu0 0
        %1394 = vmatpush.bf16.msra.mxu0 0
        %1395 = vmatpush.bf16.msra.mxu0 0
        %1396 = vmatpush.bf16.msra.mxu0 0
        %1397 = vmatpush.bf16.msra.mxu0 %v1388
        %1398 = vmatmul.bf16.gmra.mxu0 %v1385
        %v1399 = vpop.f32.mrf.mxu0
        %v1400 = vadd.f32 0.0, %v1399
        %v1401 = vpop.f32.mrf.mxu0
        %1402 = vdwg.mxu0
        %v1403 = vsel %vm656, %v1343, 0.0
        %v1404 = vsel %vm656, %v1362, 0.0
        %v1405 = vadd.f32 %v1403, %v1404
        %v1406 = vsel %vm656, %v1381, 0.0
        %v1407 = vadd.f32 %v1405, %v1406
        %v1408 = vsel %vm656, %v1400, 0.0
        %v1409 = vadd.f32 %v1407, %v1408
        %v1410 = vld [vmem:[%s10] sm:$0x1]
        %v1412 = vperm.slane %v1410, 0
        %v1414 = vadd.f32 %v1409, %v1412
        %v1415 = vadd.f32 %v653, %v1414
        %v1416 = vld [vmem:[%s11] sm:$0x1]
        %v1417 = vld [vmem:[%s12] sm:$0x1]
        %v1418 = vsel %vm656, %v1415, 0.0
        %1419 = vadd.xlane.f32.xlu0 %v1418
        %v1420 = vpop.xlane.xlu0 %1419
        %v1421 = vmul.f32 %v1420, %v666
        %v1422 = vsub.f32 %v1415, %v1421
        %v1423 = vmul.f32 %v1422, %v1422
        %v1424 = vsel %vm656, %v1423, 0.0
        %1425 = vadd.xlane.f32.xlu0 %v1424
        %v1426 = vpop.xlane.xlu0 %1425
        %v1427 = vmul.f32 %v1426, %v666
        %v1428 = vadd.f32 %v1427, 1e-05
        %v1429 = vrsqrt.pop %v1428
        %v1430 = vmul.f32 %v1429, %v1428
        %v1431 = vmul.f32 %v1430, %v1429
        %v1432 = vmul.f32 0.5, %v1431
        %v1433 = vsub.f32 1.5, %v1432
        %v1434 = vmul.f32 %v1429, %v1433
        %vm1435 = vweird.f32 %v1428
        %vm1436 = vweird.f32 %v1429
        %vm1437 = vmor %vm1435, %vm1436
        %v1438 = vsel %vm1437, %v1429, %v1434
        %v1439 = vmul.f32 %v1422, %v1438
        %v1441 = vperm.slane %v1416, 0
        %v1443 = vmul.f32 %v1439, %v1441
        %v1445 = vperm.slane %v1417, 0
        %v1447 = vadd.f32 %v1443, %v1445
        %v1448 = vpack.c.bf16 %v1447, %v1447
        %v1449 = vld [vmem:[%s13] sm:$0xf]
        %v1450 = vld [vmem:[%s13 + $0x4] sm:$0xf]
        %v1451 = vld [vmem:[%s13 + $0x8] sm:$0xf]
        %v1452 = vld [vmem:[%s13 + $0xc] sm:$0xf]
        %v1453 = vld [vmem:[%s14] sm:$0x1]
        %v1455 = vperm.slane %v1453, 0
        %v1461 = vunpack.c.l.b16 %v1449
        %v1462 = vunpack.c.l.b16 %v1450
        %v1463 = vunpack.c.l.b16 %v1451
        %v1464 = vunpack.c.l.b16 %v1452
        %v1465 = vpack.c.b16 %v1462, %v1461
        %v1466 = vpack.c.b16 %v1464, %v1463
        %v1470 = vsel %vm656, %v1448, 0
        %1472 = vmatpush.bf16.msra.mxu0 0
        %1473 = vmatpush.bf16.msra.mxu0 0
        %1474 = vmatpush.bf16.msra.mxu0 0
        %1475 = vmatpush.bf16.msra.mxu0 0
        %1476 = vmatpush.bf16.msra.mxu0 0
        %1477 = vmatpush.bf16.msra.mxu0 0
        %1478 = vmatpush.bf16.msra.mxu0 %v1466
        %1479 = vmatpush.bf16.msra.mxu0 %v1465
        %1480 = vmatmul.bf16.gmra.mxu0 %v1470
        %v1481 = vpop.f32.mrf.mxu0
        %v1482 = vadd.f32 %v1455, %v1481
        %v1483 = vpop.f32.mrf.mxu0
        %1484 = vdwg.mxu0
        %v1485 = vmul.f32 %v1482, 0.5
        %v1486 = vmul.f32 %v1482, 0.044715
        %v1487 = vmul.f32 %v1486, %v1482
        %v1488 = vmul.f32 %v1487, %v1482
        %v1489 = vadd.f32 %v1482, %v1488
        %v1490 = vmul.f32 %v1489, 0.7978846
        %v1491 = vtanh.pop %v1490
        %v1492 = vadd.f32 %v1491, 1.0
        %v1493 = vmul.f32 %v1485, %v1492
        %v1494 = vpack.c.bf16 %v1493, %v1493
        %v1495 = vld [vmem:[%s15] sm:$0xf]
        %v1496 = vld [vmem:[%s15 + $0x4] sm:$0xf]
        %v1497 = vld [vmem:[%s15 + $0x8] sm:$0xf]
        %v1498 = vld [vmem:[%s15 + $0xc] sm:$0xf]
        %v1499 = vld [vmem:[%s15 + $0x10] sm:$0xf]
        %v1500 = vld [vmem:[%s15 + $0x14] sm:$0xf]
        %v1501 = vld [vmem:[%s15 + $0x18] sm:$0xf]
        %v1502 = vld [vmem:[%s15 + $0x1c] sm:$0xf]
        %v1503 = vld [vmem:[%s15 + $0x20] sm:$0xf]
        %v1504 = vld [vmem:[%s15 + $0x24] sm:$0xf]
        %v1505 = vld [vmem:[%s15 + $0x28] sm:$0xf]
        %v1506 = vld [vmem:[%s15 + $0x2c] sm:$0xf]
        %v1507 = vld [vmem:[%s15 + $0x30] sm:$0xf]
        %v1508 = vld [vmem:[%s15 + $0x34] sm:$0xf]
        %v1509 = vld [vmem:[%s15 + $0x38] sm:$0xf]
        %v1510 = vld [vmem:[%s15 + $0x3c] sm:$0xf]
        %v1511 = vld [vmem:[%s16] sm:$0x1]
        %v1513 = vperm.slane %v1511, 0
        %v1531 = vunpack.c.l.b16 %v1495
        %v1532 = vunpack.c.l.b16 %v1496
        %v1533 = vunpack.c.l.b16 %v1497
        %v1534 = vunpack.c.l.b16 %v1498
        %v1535 = vunpack.c.l.b16 %v1499
        %v1536 = vunpack.c.l.b16 %v1500
        %v1537 = vunpack.c.l.b16 %v1501
        %v1538 = vunpack.c.l.b16 %v1502
        %v1539 = vunpack.c.l.b16 %v1503
        %v1540 = vunpack.c.l.b16 %v1504
        %v1541 = vunpack.c.l.b16 %v1505
        %v1542 = vunpack.c.l.b16 %v1506
        %v1543 = vunpack.c.l.b16 %v1507
        %v1544 = vunpack.c.l.b16 %v1508
        %v1545 = vunpack.c.l.b16 %v1509
        %v1546 = vunpack.c.l.b16 %v1510
        %v1547 = vpack.c.b16 %v1532, %v1531
        %v1548 = vpack.c.b16 %v1534, %v1533
        %v1549 = vpack.c.b16 %v1536, %v1535
        %v1550 = vpack.c.b16 %v1538, %v1537
        %v1551 = vpack.c.b16 %v1540, %v1539
        %v1552 = vpack.c.b16 %v1542, %v1541
        %v1553 = vpack.c.b16 %v1544, %v1543
        %v1554 = vpack.c.b16 %v1546, %v1545
        %1563 = vmatpush.bf16.msra.mxu0 %v1554
        %1564 = vmatpush.bf16.msra.mxu0 %v1553
        %1565 = vmatpush.bf16.msra.mxu0 %v1552
        %1566 = vmatpush.bf16.msra.mxu0 %v1551
        %1567 = vmatpush.bf16.msra.mxu0 %v1550
        %1568 = vmatpush.bf16.msra.mxu0 %v1549
        %1569 = vmatpush.bf16.msra.mxu0 %v1548
        %1570 = vmatpush.bf16.msra.mxu0 %v1547
        %1571 = vmatmul.bf16.gmra.mxu0 %v1494
        %v1572 = vpop.f32.mrf.mxu0
        %v1573 = vadd.f32 %v1513, %v1572
        %v1574 = vpop.f32.mrf.mxu0
        %1575 = vdwg.mxu0
        %v1576 = vadd.f32 %v1415, %v1573
        %v1577 = vpack.c.bf16 %v1576, %v1576
        %v1578 = vld [vmem:[%s17] sm:$0xf]
        %v1579 = vld [vmem:[%s17 + $0x4] sm:$0xf]
        %v1580 = vld [vmem:[%s17 + $0x8] sm:$0xf]
        %v1581 = vld [vmem:[%s17 + $0xc] sm:$0xf]
        %v1582 = vld [vmem:[%s18] sm:$0x1]
        %v1584 = vperm.slane %v1582, 0
        %v1590 = vunpack.c.l.b16 %v1578
        %v1591 = vunpack.c.l.b16 %v1579
        %v1592 = vunpack.c.l.b16 %v1580
        %v1593 = vunpack.c.l.b16 %v1581
        %v1594 = vpack.c.b16 %v1591, %v1590
        %v1595 = vpack.c.b16 %v1593, %v1592
        %v1599 = vsel %vm656, %v1577, 0
        %1601 = vmatpush.bf16.msra.mxu0 0
        %1602 = vmatpush.bf16.msra.mxu0 0
        %1603 = vmatpush.bf16.msra.mxu0 0
        %1604 = vmatpush.bf16.msra.mxu0 0
        %1605 = vmatpush.bf16.msra.mxu0 0
        %1606 = vmatpush.bf16.msra.mxu0 0
        %1607 = vmatpush.bf16.msra.mxu0 %v1595
        %1608 = vmatpush.bf16.msra.mxu0 %v1594
        %1609 = vmatmul.bf16.gmra.mxu0 %v1599
        %v1610 = vpop.f32.mrf.mxu0
        %v1611 = vadd.f32 %v1584, %v1610
        %v1612 = vpop.f32.mrf.mxu0
        %1613 = vdwg.mxu0
        %v1614 = vmul.f32 %v1611, 0.5
        %v1615 = vmul.f32 %v1611, 0.044715
        %v1616 = vmul.f32 %v1615, %v1611
        %v1617 = vmul.f32 %v1616, %v1611
        %v1618 = vadd.f32 %v1611, %v1617
        %v1619 = vmul.f32 %v1618, 0.7978846
        %v1620 = vtanh.pop %v1619
        %v1621 = vadd.f32 %v1620, 1.0
        %v1622 = vmul.f32 %v1614, %v1621
        %v1623 = vpack.c.bf16 %v1622, %v1622
        %v1624 = vld [vmem:[%s19] sm:$0xf]
        %v1625 = vld [vmem:[%s19 + $0x4] sm:$0xf]
        %v1626 = vld [vmem:[%s19 + $0x8] sm:$0xf]
        %v1627 = vld [vmem:[%s19 + $0xc] sm:$0xf]
        %v1628 = vld [vmem:[%s19 + $0x10] sm:$0xf]
        %v1629 = vld [vmem:[%s19 + $0x14] sm:$0xf]
        %v1630 = vld [vmem:[%s19 + $0x18] sm:$0xf]
        %v1631 = vld [vmem:[%s19 + $0x1c] sm:$0xf]
        %v1632 = vld [vmem:[%s19 + $0x20] sm:$0xf]
        %v1633 = vld [vmem:[%s19 + $0x24] sm:$0xf]
        %v1634 = vld [vmem:[%s19 + $0x28] sm:$0xf]
        %v1635 = vld [vmem:[%s19 + $0x2c] sm:$0xf]
        %v1636 = vld [vmem:[%s19 + $0x30] sm:$0xf]
        %v1637 = vld [vmem:[%s19 + $0x34] sm:$0xf]
        %v1638 = vld [vmem:[%s19 + $0x38] sm:$0xf]
        %v1639 = vld [vmem:[%s19 + $0x3c] sm:$0xf]
        %v1640 = vld [vmem:[%s20] sm:$0x1]
        %v1642 = vperm.slane %v1640, 0
        %v1660 = vunpack.c.l.b16 %v1624
        %v1661 = vunpack.c.l.b16 %v1625
        %v1662 = vunpack.c.l.b16 %v1626
        %v1663 = vunpack.c.l.b16 %v1627
        %v1664 = vunpack.c.l.b16 %v1628
        %v1665 = vunpack.c.l.b16 %v1629
        %v1666 = vunpack.c.l.b16 %v1630
        %v1667 = vunpack.c.l.b16 %v1631
        %v1668 = vunpack.c.l.b16 %v1632
        %v1669 = vunpack.c.l.b16 %v1633
        %v1670 = vunpack.c.l.b16 %v1634
        %v1671 = vunpack.c.l.b16 %v1635
        %v1672 = vunpack.c.l.b16 %v1636
        %v1673 = vunpack.c.l.b16 %v1637
        %v1674 = vunpack.c.l.b16 %v1638
        %v1675 = vunpack.c.l.b16 %v1639
        %v1676 = vpack.c.b16 %v1661, %v1660
        %v1677 = vpack.c.b16 %v1663, %v1662
        %v1678 = vpack.c.b16 %v1665, %v1664
        %v1679 = vpack.c.b16 %v1667, %v1666
        %v1680 = vpack.c.b16 %v1669, %v1668
        %v1681 = vpack.c.b16 %v1671, %v1670
        %v1682 = vpack.c.b16 %v1673, %v1672
        %v1683 = vpack.c.b16 %v1675, %v1674
        %1692 = vmatpush.bf16.msra.mxu0 %v1683
        %1693 = vmatpush.bf16.msra.mxu0 %v1682
        %1694 = vmatpush.bf16.msra.mxu0 %v1681
        %1695 = vmatpush.bf16.msra.mxu0 %v1680
        %1696 = vmatpush.bf16.msra.mxu0 %v1679
        %1697 = vmatpush.bf16.msra.mxu0 %v1678
        %1698 = vmatpush.bf16.msra.mxu0 %v1677
        %1699 = vmatpush.bf16.msra.mxu0 %v1676
        %1700 = vmatmul.bf16.gmra.mxu0 %v1623
        %v1701 = vpop.f32.mrf.mxu0
        %v1702 = vadd.f32 %v1642, %v1701
        %v1703 = vpop.f32.mrf.mxu0
        %1704 = vdwg.mxu0
        %v1705 = vadd.f32 %v1576, %v1702
        %1706 = vst.msk [vmem:[%s647] sm:$0xff] %vm656, %v1705
        %s1707 = sand.u32 %s489, 1
        %s1708 = scalar_lea.sflag [#allocation3], %s1707
        %s1709 = sand.u32 %s489, 1
        %s1710 = smul.addr %s1709, 8
        %s1711 = scalar_lea.vmem [#allocation2], %s1710
        // Predicated region
        $region105: #{tpu_custom_call.1} parent=103 // pred_check
          %p1712 = pneg %p499
        $region106: #{tpu_custom_call.1} parent=103 // pred_check_branch
          %1714 = sbr.rel (%p1712) target = $region108
        $region107: #{tpu_custom_call.1} parent=103 // pred_region
          %1716 = vsyncadd %s1708, 0
          %s1717 = smul.addr %s35, 8
          %s1718 = scalar_lea.hbm %s21, %s1717
          %s1720 = sshll.u32 %s1711, 4
          %s1721 = int_to_ptr.vmem [resolvable:$true] %s1720
          %s1722 = sshll.u32 %s1718, 4
          %s1723 = int_to_ptr.hbm [resolvable:$true] %s1722
          %1725 = dma.vmem_to_hbm [thread:$0]  %s1721, 128, %s1723, %s1708
        $region108: #{tpu_custom_call.1} parent=103 // pred_fallthru
          _
      $region104: #{tpu_custom_call.1} parent=5 // pred_fallthru
        _
      %p1726 = scmp.le.s32.totalorder 2, %s30
      // Predicated region
      $region109: #{tpu_custom_call.1} parent=5 // pred_check
        %p1727 = pneg %p1726
      $region110: #{tpu_custom_call.1} parent=5 // pred_check_branch
        %1729 = sbr.rel (%p1727) target = $region112
      $region111: #{tpu_custom_call.1} parent=5 // pred_region
        %s1730 = ssub.s32 %s30, 2
        // Predicated region
        $region113: #{tpu_custom_call.1} parent=111 // pred_check
          %p1731 = pneg %p505
        $region114: #{tpu_custom_call.1} parent=111 // pred_check_branch
          %1733 = sbr.rel (%p1731) target = $region116
        $region115: #{tpu_custom_call.1} parent=111 // pred_region
          %s1734 = sand.u32 %s490, 1
          %s1735 = scalar_lea.sflag [#allocation3], %s1734
          %s1736 = sand.u32 %s490, 1
          %s1737 = smul.addr %s1736, 8
          %s1738 = scalar_lea.vmem [#allocation2], %s1737
          %1740 = dma.done %s1735, 128
        $region116: #{tpu_custom_call.1} parent=111 // pred_fallthru
          _
      $region112: #{tpu_custom_call.1} parent=5 // pred_fallthru
        _
    $region6: #{tpu_custom_call.1} parent=1 // loop_footer
      %s34 = sadd.s32 1, %s30
    $region7: #{tpu_custom_call.1} parent=1 // loop_footer_branch
      %29 = sbr.rel target = $region3
    $region8: #{tpu_custom_call.1} parent=1 // loop_exit
      _
    %1741 = vsyncpa [#allocation3], 1
    %s1742 = scalar_lea.sflag [#allocation3], 1
    %1743 = vsyncpa %s1742, 1

</llo_original>
